<compile_context>
chip_gen: v7x
topology: tpu7x:2x2x1
jax: 0.10.0
libtpu: 0.0.40
codegen_flags: <defaults>
</compile_context>

<pallas_src>
import functools

import jax
import jax.numpy as jnp
from jax import lax
from jax.experimental import pallas as pl
from jax.experimental.pallas import tpu as pltpu

BN_EPS = 1e-5
NEG_BIG = -1e30


# ----------------------------------------------------------------------------
# small helpers
# ----------------------------------------------------------------------------
def _b16(x):
    return x.astype(jnp.bfloat16)


def _row(x):
    return x.reshape(1, -1).astype(jnp.float32)


def fold_bn(lin, bn):
    """Fold eval-mode BatchNorm1d into the weight (scale) + a single shift."""
    scale = bn["gamma"] / jnp.sqrt(bn["var"] + BN_EPS)
    w = lin["w"] * scale[None, :]
    shift = bn["beta"] + scale * (lin["b"] - bn["mean"])
    return w, shift


def _hw_config():
    """Generation-aware point-tile target and scoped-VMEM limit."""
    vmem = None
    try:
        info = pltpu.get_tpu_info()
        vmem = getattr(info, "vmem_capacity_bytes", None)
    except Exception:
        vmem = None
    if vmem is not None and int(vmem) >= 96 * 1024 * 1024:     # v5e / v6e (128 MiB)
        return 1024, 100 * 1024 * 1024
    return 512, 48 * 1024 * 1024                               # v7x (64 MiB / TC) / unknown


def _choose_tile(n, target):
    """Largest power-of-two point tile (>=128, <=target) minimizing padding."""
    best_tm, best_pad = None, None
    tm = target
    while tm >= 128:
        n_pad = ((n + tm - 1) // tm) * tm
        if best_pad is None or n_pad < best_pad:
            best_tm, best_pad = tm, n_pad
        tm //= 2
    return best_tm, best_pad


def _inv_spec(shape):
    """BlockSpec for a grid-invariant (weight) operand on a (B, npt) grid."""
    zeros = (0,) * len(shape)
    return pl.BlockSpec(shape, lambda b, p: zeros)


def _update_running_max(maxbuf, h, *, pt, tm, n_valid, need_mask):
    """Fused max-over-points into a VMEM scratch.

    Padded rows exist only in the final point tile, so the -inf masking
    (compare+select over a (tm, C) tile) is gated on that tile only, and
    skipped entirely when the point count is tile-aligned.
    """
    if need_mask:
        last = pl.num_programs(1) - 1

        @pl.when(pt != last)
        def _():
            maxbuf[...] = jnp.maximum(maxbuf[...],
                                      jnp.max(h, axis=0, keepdims=True))

        @pl.when(pt == last)
        def _():
            row = pt * tm + lax.broadcasted_iota(jnp.int32, (tm, 1), 0)
            hm = jnp.where(row < n_valid, h, -jnp.inf)
            maxbuf[...] = jnp.maximum(maxbuf[...],
                                      jnp.max(hm, axis=0, keepdims=True))
    else:
        maxbuf[...] = jnp.maximum(maxbuf[...],
                                  jnp.max(h, axis=0, keepdims=True))


# ----------------------------------------------------------------------------
# Kernel A: STN3d encoder  (3->64->128->1024, fused running max over points)
# ----------------------------------------------------------------------------
def _stn3d_encoder_kernel(x_ref, w1_ref, s1_ref, w2_ref, s2_ref, w3_ref, s3_ref,
                          o_ref, maxbuf, *, n_valid, tm, need_mask):
    pt = pl.program_id(1)

    @pl.when(pt == 0)
    def _():
        maxbuf[...] = jnp.full(maxbuf.shape, -jnp.inf, maxbuf.dtype)

    x = x_ref[0]                                                   # (tm, 3) f32
    h = jnp.maximum(jnp.dot(x, w1_ref[...],
                            preferred_element_type=jnp.float32) + s1_ref[...], 0.0)
    h = jnp.maximum(jnp.dot(h.astype(jnp.bfloat16), w2_ref[...],
                            preferred_element_type=jnp.float32) + s2_ref[...], 0.0)
    h = jnp.maximum(jnp.dot(h.astype(jnp.bfloat16), w3_ref[...],
                            preferred_element_type=jnp.float32) + s3_ref[...], 0.0)

    _update_running_max(maxbuf, h, pt=pt, tm=tm, n_valid=n_valid,
                        need_mask=need_mask)

    @pl.when(pt == pl.num_programs(1) - 1)
    def _():
        o_ref[0] = maxbuf[...]


def _stn3d_encode(pc, w1, s1, w2, s2, w3, s3, *, n_valid, tm, need_mask,
                  vmem_limit):
    B, n_pad, k = pc.shape
    npt = n_pad // tm
    kern = functools.partial(_stn3d_encoder_kernel, n_valid=n_valid, tm=tm,
                             need_mask=need_mask)
    return pl.pallas_call(
        kern,
        out_shape=jax.ShapeDtypeStruct((B, 1, 1024), jnp.float32),
        grid=(B, npt),
        in_specs=[
            pl.BlockSpec((1, tm, k), lambda b, p: (b, p, 0)),
            _inv_spec((k, 64)),
            _inv_spec((1, 64)),
            _inv_spec((64, 128)),
            _inv_spec((1, 128)),
            _inv_spec((128, 1024)),
            _inv_spec((1, 1024)),
        ],
        out_specs=pl.BlockSpec((1, 1, 1024), lambda b, p: (b, 0, 0)),
        scratch_shapes=[pltpu.VMEM((1, 1024), jnp.float32)],
        compiler_params=pltpu.CompilerParams(
            dimension_semantics=("parallel", "arbitrary"),
            vmem_limit_bytes=vmem_limit),
    )(pc, w1, s1, w2, s2, w3, s3)


# ----------------------------------------------------------------------------
# Kernel B: trunk conv1->conv2->conv3 (STN3d folded into conv1)
#           + partial convs1 for out1/out2/out3   (segA, stored bf16)
#           + FUSED fSTN(k=128) encoder (128->64->128->1024 + running max)
# ----------------------------------------------------------------------------
def _trunk_kernel(pc_ref, fw1_ref, s1_ref, w2_ref, s2_ref, w3_ref, s3_ref,
                  wa_ref, wb_ref, wc_ref,
                  fwa_ref, fsa_ref, fwb_ref, fsb_ref, fwc_ref, fsc_ref,
                  out3_ref, segA_ref, fpool_ref, maxbuf,
                  *, n_valid, tm, need_mask):
    pt = pl.program_id(1)

    @pl.when(pt == 0)
    def _():
        maxbuf[...] = jnp.full(maxbuf.shape, -jnp.inf, maxbuf.dtype)

    x = pc_ref[0]                                                  # (tm, 3) f32
    h1 = jnp.maximum(jnp.dot(x, fw1_ref[0],
                             preferred_element_type=jnp.float32) + s1_ref[...], 0.0)
    h1b = h1.astype(jnp.bfloat16)
    h2 = jnp.maximum(jnp.dot(h1b, w2_ref[...],
                             preferred_element_type=jnp.float32) + s2_ref[...], 0.0)
    h2b = h2.astype(jnp.bfloat16)
    h3 = jnp.maximum(jnp.dot(h2b, w3_ref[...],
                             preferred_element_type=jnp.float32) + s3_ref[...], 0.0)
    h3b = h3.astype(jnp.bfloat16)
    out3_ref[0] = h3b

    # partial convs1 (out1/out2/out3 slices): f32 accumulate, bf16 store
    seg = (jnp.dot(h1b, wa_ref[...], preferred_element_type=jnp.float32)
           + jnp.dot(h2b, wb_ref[...], preferred_element_type=jnp.float32)
           + jnp.dot(h3b, wc_ref[...], preferred_element_type=jnp.float32))
    segA_ref[0] = seg.astype(jnp.bfloat16)

    # fused fSTN encoder on out3 (no HBM re-read of out3)
    f1 = jnp.maximum(jnp.dot(h3b, fwa_ref[...],
                             preferred_element_type=jnp.float32) + fsa_ref[...], 0.0)
    f2 = jnp.maximum(jnp.dot(f1.astype(jnp.bfloat16), fwb_ref[...],
                             preferred_element_type=jnp.float32) + fsb_ref[...], 0.0)
    f3 = jnp.maximum(jnp.dot(f2.astype(jnp.bfloat16), fwc_ref[...],
                             preferred_element_type=jnp.float32) + fsc_ref[...], 0.0)
    _update_running_max(maxbuf, f3, pt=pt, tm=tm, n_valid=n_valid,
                        need_mask=need_mask)

    @pl.when(pt == pl.num_programs(1) - 1)
    def _():
        fpool_ref[0] = maxbuf[...]


def _trunk(pc, fw1, s1, w2, s2, w3, s3, wa, wb, wc,
           fwa, fsa, fwb, fsb, fwc, fsc, *, n_valid, tm, need_mask, vmem_limit):
    B, n_pad, _ = pc.shape
    npt = n_pad // tm
    kern = functools.partial(_trunk_kernel, n_valid=n_valid, tm=tm,
                             need_mask=need_mask)
    return pl.pallas_call(
        kern,
        out_shape=(jax.ShapeDtypeStruct((B, n_pad, 128), jnp.bfloat16),
                   jax.ShapeDtypeStruct((B, n_pad, 256), jnp.bfloat16),
                   jax.ShapeDtypeStruct((B, 1, 1024), jnp.float32)),
        grid=(B, npt),
        in_specs=[
            pl.BlockSpec((1, tm, 3), lambda b, p: (b, p, 0)),
            pl.BlockSpec((1, 3, 64), lambda b, p: (b, 0, 0)),
            _inv_spec((1, 64)),
            _inv_spec((64, 128)),
            _inv_spec((1, 128)),
            _inv_spec((128, 128)),
            _inv_spec((1, 128)),
            _inv_spec((64, 256)),
            _inv_spec((128, 256)),
            _inv_spec((128, 256)),
            _inv_spec((128, 64)),
            _inv_spec((1, 64)),
            _inv_spec((64, 128)),
            _inv_spec((1, 128)),
            _inv_spec((128, 1024)),
            _inv_spec((1, 1024)),
        ],
        out_specs=(pl.BlockSpec((1, tm, 128), lambda b, p: (b, p, 0)),
                   pl.BlockSpec((1, tm, 256), lambda b, p: (b, p, 0)),
                   pl.BlockSpec((1, 1, 1024), lambda b, p: (b, 0, 0))),
        scratch_shapes=[pltpu.VMEM((1, 1024), jnp.float32)],
        compiler_params=pltpu.CompilerParams(
            dimension_semantics=("parallel", "arbitrary"),
            vmem_limit_bytes=vmem_limit),
    )(pc, fw1, s1, w2, s2, w3, s3, wa, wb, wc, fwa, fsa, fwb, fsb, fwc, fsc)


# ----------------------------------------------------------------------------
# Kernel C: conv4 (fSTN folded) -> conv5/bn5 + fused max-over-points
#           + partial convs1 for out4/out5 (segB, stored bf16)
# ----------------------------------------------------------------------------
def _conv45_kernel(out3_ref, segA_ref, w4_ref, s4_ref, w5_ref, s5_ref,
                   wd_ref, we_ref, seg_ref, omax_ref, maxbuf,
                   *, n_valid, tm, need_mask):
    pt = pl.program_id(1)

    @pl.when(pt == 0)
    def _():
        maxbuf[...] = jnp.full(maxbuf.shape, -jnp.inf, maxbuf.dtype)

    x3 = out3_ref[0]                                               # (tm, 128) bf16
    h4 = jnp.maximum(jnp.dot(x3, w4_ref[0],
                             preferred_element_type=jnp.float32) + s4_ref[...], 0.0)
    h4b = h4.astype(jnp.bfloat16)
    h5 = jnp.dot(h4b, w5_ref[...],
                 preferred_element_type=jnp.float32) + s5_ref[...]  # (tm,2048) no ReLU

    _update_running_max(maxbuf, h5, pt=pt, tm=tm, n_valid=n_valid,
                        need_mask=need_mask)

    h5b = h5.astype(jnp.bfloat16)
    seg = (segA_ref[0].astype(jnp.float32)
           + jnp.dot(h4b, wd_ref[...], preferred_element_type=jnp.float32)
           + jnp.dot(h5b, we_ref[...], preferred_element_type=jnp.float32))
    seg_ref[0] = seg.astype(jnp.bfloat16)

    @pl.when(pt == pl.num_programs(1) - 1)
    def _():
        omax_ref[0] = maxbuf[...]


def _conv45(out3, segA, fw4, s4, w5, s5, wd, we, *, n_valid, tm, need_mask,
            vmem_limit):
    B, n_pad, _ = out3.shape
    npt = n_pad // tm
    kern = functools.partial(_conv45_kernel, n_valid=n_valid, tm=tm,
                             need_mask=need_mask)
    return pl.pallas_call(
        kern,
        out_shape=(jax.ShapeDtypeStruct((B, n_pad, 256), jnp.bfloat16),
                   jax.ShapeDtypeStruct((B, 1, 2048), jnp.float32)),
        grid=(B, npt),
        in_specs=[
            pl.BlockSpec((1, tm, 128), lambda b, p: (b, p, 0)),
            pl.BlockSpec((1, tm, 256), lambda b, p: (b, p, 0)),
            pl.BlockSpec((1, 128, 512), lambda b, p: (b, 0, 0)),
            _inv_spec((1, 512)),
            _inv_spec((512, 2048)),
            _inv_spec((1, 2048)),
            _inv_spec((512, 256)),
            _inv_spec((2048, 256)),
        ],
        out_specs=(pl.BlockSpec((1, tm, 256), lambda b, p: (b, p, 0)),
                   pl.BlockSpec((1, 1, 2048), lambda b, p: (b, 0, 0))),
        scratch_shapes=[pltpu.VMEM((1, 2048), jnp.float32)],
        compiler_params=pltpu.CompilerParams(
            dimension_semantics=("parallel", "arbitrary"),
            vmem_limit_bytes=vmem_limit),
    )(out3, segA, fw4, s4, w5, s5, wd, we)


# ----------------------------------------------------------------------------
# Kernel D: segmentation head: finish convs1 (shift+ReLU) -> convs2 -> convs3
#           -> convs4 -> log_softmax, lane-padded 128-wide f32 output.
# ----------------------------------------------------------------------------
def _seg_head_kernel(seg_ref, gseg_ref, ss1_ref, w2_ref, ss2_ref, w3_ref, ss3_ref,
                     w4_ref, b4_ref, o_ref):
    h = jnp.maximum(seg_ref[0].astype(jnp.float32) + gseg_ref[0] + ss1_ref[...],
                    0.0)                                           # (tm, 256)
    h = jnp.maximum(jnp.dot(h.astype(jnp.bfloat16), w2_ref[...],
                            preferred_element_type=jnp.float32) + ss2_ref[...], 0.0)
    h = jnp.maximum(jnp.dot(h.astype(jnp.bfloat16), w3_ref[...],
                            preferred_element_type=jnp.float32) + ss3_ref[...], 0.0)
    logits = jnp.dot(h.astype(jnp.bfloat16), w4_ref[...],
                     preferred_element_type=jnp.float32) + b4_ref[...]  # (tm, 128)
    m = jnp.max(logits, axis=-1, keepdims=True)
    s = logits - m
    lse = jnp.log(jnp.sum(jnp.exp(s), axis=-1, keepdims=True))
    o_ref[0] = s - lse


def _seg_head(segB, gseg3, ss1, w2, ss2, w3, ss3, w4, b4, *, tm, vmem_limit):
    B, n_pad, _ = segB.shape
    npt = n_pad // tm
    padp = w4.shape[1]
    return pl.pallas_call(
        _seg_head_kernel,
        out_shape=jax.ShapeDtypeStruct((B, n_pad, padp), jnp.float32),
        grid=(B, npt),
        in_specs=[
            pl.BlockSpec((1, tm, 256), lambda b, p: (b, p, 0)),
            pl.BlockSpec((1, 1, 256), lambda b, p: (b, 0, 0)),
            _inv_spec((1, 256)),
            _inv_spec((256, 256)),
            _inv_spec((1, 256)),
            _inv_spec((256, 128)),
            _inv_spec((1, 128)),
            _inv_spec((128, padp)),
            _inv_spec((1, padp)),
        ],
        out_specs=pl.BlockSpec((1, tm, padp), lambda b, p: (b, p, 0)),
        compiler_params=pltpu.CompilerParams(
            dimension_semantics=("parallel", "parallel"),
            vmem_limit_bytes=vmem_limit),
    )(segB, gseg3, ss1, w2, ss2, w3, ss3, w4, b4)


# ----------------------------------------------------------------------------
# Tiny M=B FC chains: plain XLA (pure weight-DMA; Pallas adds no value here)
# ----------------------------------------------------------------------------
def _stn_fc_xla(sp, pooled):
    """STN fc1->fc2->fc3 (+ identity folded into the fc3 bias)."""
    k = sp["k"]
    wf1, sf1 = fold_bn(sp["fc1"], sp["bn4"])
    wf2, sf2 = fold_bn(sp["fc2"], sp["bn5"])
    bf3 = sp["fc3"]["b"] + jnp.eye(k, dtype=jnp.float32).reshape(-1)
    h = jnp.maximum(jnp.dot(_b16(pooled), _b16(wf1),
                            preferred_element_type=jnp.float32) + sf1, 0.0)
    h = jnp.maximum(jnp.dot(_b16(h), _b16(wf2),
                            preferred_element_type=jnp.float32) + sf2, 0.0)
    t = jnp.dot(_b16(h), _b16(sp["fc3"]["w"]),
                preferred_element_type=jnp.float32) + bf3
    return t.reshape(-1, k, k)


def _cls_head_xla(p, out_max):
    wf1, sf1 = fold_bn(p["fc1"], p["bnc1"])
    wf2, sf2 = fold_bn(p["fc2"], p["bnc2"])
    h = jnp.maximum(jnp.dot(_b16(out_max), _b16(wf1),
                            preferred_element_type=jnp.float32) + sf1, 0.0)
    # TODO(synk): Dropout(p=0.3) is an eval-mode identity (no RNG drop mask).
    h = jnp.maximum(jnp.dot(_b16(h), _b16(wf2),
                            preferred_element_type=jnp.float32) + sf2, 0.0)
    return jnp.dot(_b16(h), _b16(p["fc3"]["w"]),
                   preferred_element_type=jnp.float32) + p["fc3"]["b"]


# ----------------------------------------------------------------------------
# Deterministic parameter construction (synthetic; shapes follow the module)
# ----------------------------------------------------------------------------
def init_linearlike(key, cin, cout):
    kw, kb = jax.random.split(key)
    return {
        "w": jax.random.normal(kw, (cin, cout), jnp.float32) * 0.05,
        "b": jax.random.normal(kb, (cout,), jnp.float32) * 0.05,
    }


def init_bn(key, c):
    kg, kb, km, kv = jax.random.split(key, 4)
    return {
        "gamma": 1.0 + 0.05 * jax.random.normal(kg, (c,), jnp.float32),
        "beta": 0.05 * jax.random.normal(kb, (c,), jnp.float32),
        "mean": 0.05 * jax.random.normal(km, (c,), jnp.float32),
        "var": 1.0 + 0.1 * jax.random.uniform(kv, (c,), jnp.float32),
    }


def init_stn(key, k_in):
    ks = jax.random.split(key, 11)
    return {
        "k": k_in,
        "conv1": init_linearlike(ks[0], k_in, 64),
        "conv2": init_linearlike(ks[1], 64, 128),
        "conv3": init_linearlike(ks[2], 128, 1024),
        "fc1": init_linearlike(ks[3], 1024, 512),
        "fc2": init_linearlike(ks[4], 512, 256),
        "fc3": init_linearlike(ks[5], 256, k_in * k_in),
        "bn1": init_bn(ks[6], 64),
        "bn2": init_bn(ks[7], 128),
        "bn3": init_bn(ks[8], 1024),
        "bn4": init_bn(ks[9], 512),
        "bn5": init_bn(ks[10], 256),
    }


def init_pointnet(key, cat_num=16, part_num=50):
    ks = jax.random.split(key, 24)
    return {
        "cat_num": cat_num,
        "part_num": part_num,
        "stn": init_stn(ks[0], 3),
        "fstn": init_stn(ks[1], 128),
        "conv1": init_linearlike(ks[2], 3, 64),
        "conv2": init_linearlike(ks[3], 64, 128),
        "conv3": init_linearlike(ks[4], 128, 128),
        "conv4": init_linearlike(ks[5], 128, 512),
        "conv5": init_linearlike(ks[6], 512, 2048),
        "bn1": init_bn(ks[7], 64),
        "bn2": init_bn(ks[8], 128),
        "bn3": init_bn(ks[9], 128),
        "bn4": init_bn(ks[10], 512),
        "bn5": init_bn(ks[11], 2048),
        "fc1": init_linearlike(ks[12], 2048, 256),
        "fc2": init_linearlike(ks[13], 256, 256),
        "fc3": init_linearlike(ks[14], 256, cat_num),
        "bnc1": init_bn(ks[15], 256),
        "bnc2": init_bn(ks[16], 256),
        "convs1": init_linearlike(ks[17], 4928 + cat_num, 256),
        "convs2": init_linearlike(ks[18], 256, 256),
        "convs3": init_linearlike(ks[19], 256, 128),
        "convs4": init_linearlike(ks[20], 128, part_num),
        "bns1": init_bn(ks[21], 256),
        "bns2": init_bn(ks[22], 256),
        "bns3": init_bn(ks[23], 128),
    }


# ----------------------------------------------------------------------------
# Full forward
# ----------------------------------------------------------------------------
def pointnet_densecls_forward(p, point_cloud, label):
    """point_cloud: (B, 3, N) (PyTorch NCW), label: (B, cat_num) one-hot."""
    B, _, N = point_cloud.shape
    cat = p["cat_num"]
    part = p["part_num"]
    tm_target, vmem_limit = _hw_config()
    tm, n_pad = _choose_tile(N, tm_target)
    need_mask = (n_pad != N)

    pc = jnp.transpose(point_cloud, (0, 2, 1)).astype(jnp.float32)   # (B, N, 3)
    if need_mask:
        pc = jnp.pad(pc, ((0, 0), (0, n_pad - N), (0, 0)))

    # ---- STN3d: Pallas encoder + XLA FC chain --------------------------------
    sp = p["stn"]
    sw1, sb1 = fold_bn(sp["conv1"], sp["bn1"])
    sw2, sb2 = fold_bn(sp["conv2"], sp["bn2"])
    sw3, sb3 = fold_bn(sp["conv3"], sp["bn3"])
    pooled = _stn3d_encode(pc, sw1, _row(sb1), _b16(sw2), _row(sb2),
                           _b16(sw3), _row(sb3),
                           n_valid=N, tm=tm, need_mask=need_mask,
                           vmem_limit=vmem_limit)
    trans = _stn_fc_xla(sp, pooled.reshape(B, 1024))                 # (B, 3, 3)

    # ---- fold STN3d into conv1 ------------------------------------------------
    w1, s1 = fold_bn(p["conv1"], p["bn1"])
    fw1 = jnp.einsum("bij,jk->bik", trans, w1)                       # (B, 3, 64)
    w2, s2 = fold_bn(p["conv2"], p["bn2"])
    w3, s3 = fold_bn(p["conv3"], p["bn3"])

    # ---- convs1 weight slices (scale folded); concat never materialized -------
    ws1, ss1 = fold_bn(p["convs1"], p["bns1"])
    o = 2048
    wg = ws1[:o]
    wl = ws1[o:o + cat]
    wa = ws1[o + cat:o + cat + 64]
    wb = ws1[o + cat + 64:o + cat + 192]
    wc = ws1[o + cat + 192:o + cat + 320]
    wd = ws1[o + cat + 320:o + cat + 832]
    we = ws1[o + cat + 832:]

    # ---- trunk (conv1..3 + fused fSTN encoder + convs1 partials) --------------
    fsp = p["fstn"]
    fwa, fsa = fold_bn(fsp["conv1"], fsp["bn1"])
    fwb, fsb = fold_bn(fsp["conv2"], fsp["bn2"])
    fwc, fsc = fold_bn(fsp["conv3"], fsp["bn3"])
    out3, segA, fpool = _trunk(
        pc, fw1, _row(s1), _b16(w2), _row(s2), _b16(w3), _row(s3),
        _b16(wa), _b16(wb), _b16(wc),
        _b16(fwa), _row(fsa), _b16(fwb), _row(fsb), _b16(fwc), _row(fsc),
        n_valid=N, tm=tm, need_mask=need_mask, vmem_limit=vmem_limit)

    trans_feat = _stn_fc_xla(fsp, fpool.reshape(B, 1024))            # (B, 128, 128)

    # ---- conv4 (fSTN folded) -> conv5 + max, + convs1 partials ----------------
    w4, s4 = fold_bn(p["conv4"], p["bn4"])
    fw4 = jnp.einsum("bij,jk->bik", trans_feat, w4)                  # (B, 128, 512)
    w5, s5 = fold_bn(p["conv5"], p["bn5"])
    segB, out_max = _conv45(out3, segA, _b16(fw4), _row(s4), _b16(w5), _row(s5),
                            _b16(wd), _b16(we),
                            n_valid=N, tm=tm, need_mask=need_mask,
                            vmem_limit=vmem_limit)
    out_max2 = out_max.reshape(B, 2048)

    # ---- classification head + global convs1 contribution (tiny -> XLA) -------
    net = _cls_head_xla(p, out_max2)
    gseg = (jnp.dot(_b16(out_max2), _b16(wg), preferred_element_type=jnp.float32)
            + jnp.dot(_b16(label.astype(jnp.float32)), _b16(wl),
                      preferred_element_type=jnp.float32))
    gseg3 = gseg.reshape(B, 1, 256)

    # ---- segmentation head -----------------------------------------------------
    ws2, ss2 = fold_bn(p["convs2"], p["bns2"])
    ws3, ss3 = fold_bn(p["convs3"], p["bns3"])
    padp = max(128, ((part + 127) // 128) * 128)
    w4s = jnp.zeros((128, padp), jnp.float32).at[:, :part].set(p["convs4"]["w"])
    b4s = jnp.full((padp,), NEG_BIG, jnp.float32).at[:part].set(p["convs4"]["b"])
    net2_pad = _seg_head(segB, gseg3, _row(ss1), _b16(ws2), _row(ss2),
                         _b16(ws3), _row(ss3), _b16(w4s), _row(b4s),
                         tm=tm, vmem_limit=vmem_limit)
    net2 = net2_pad[:, :N, :part]
    return net, net2, trans_feat


# ----------------------------------------------------------------------------
if __name__ == "__main__":
    key = jax.random.PRNGKey(0)
    kp, kx, kl = jax.random.split(key, 3)

    B, N, CAT, PART = 2, 16, 16, 50
    params = init_pointnet(kp, cat_num=CAT, part_num=PART)

    point_cloud = jax.random.normal(kx, (B, 3, N), jnp.float32)      # (B, 3, n_pts)
    label = jax.nn.one_hot(jax.random.randint(kl, (B,), 0, CAT), CAT,
                           dtype=jnp.float32)                        # (B, cat_num)

    net, net2, trans_feat = pointnet_densecls_forward(params, point_cloud, label)
    jax.block_until_ready((net, net2, trans_feat))

    assert net.shape == (B, CAT)
    assert net2.shape == (B, N, PART)
    assert trans_feat.shape == (B, 128, 128)
    assert bool(jnp.all(jnp.isfinite(net)))
    assert bool(jnp.all(jnp.isfinite(net2)))
    assert bool(jnp.all(jnp.isfinite(trans_feat)))
    print("KERNEL_OK")
</pallas_src>

<mosaic_0001>
module attributes {stable_mosaic.version = 11 : i64} {
  func.func @_stn3d_encoder_kernel(%arg0: i32, %arg1: i32, %arg2: memref<1x128x3xf32, #tpu.memory_space<vmem>>, %arg3: memref<3x64xf32, #tpu.memory_space<vmem>>, %arg4: memref<1x64xf32, #tpu.memory_space<vmem>>, %arg5: memref<64x128xbf16, #tpu.memory_space<vmem>>, %arg6: memref<1x128xf32, #tpu.memory_space<vmem>>, %arg7: memref<128x1024xbf16, #tpu.memory_space<vmem>>, %arg8: memref<1x1024xf32, #tpu.memory_space<vmem>>, %arg9: memref<1x1x1024xf32, #tpu.memory_space<vmem>>, %arg10: memref<1x1024xf32, #tpu.memory_space<vmem>>) attributes {dimension_semantics = [#tpu.dimension_semantics<parallel>, #tpu.dimension_semantics<arbitrary>], iteration_bounds = array<i64: 2, 1>, scalar_prefetch = 0 : i64, scratch_operands = 1 : i64, tpu.core_type = #tpu.core_type<tc>, window_params = [{transform_indices = @transform_0, window_bounds = array<i64: 1, 128, 3>}, {pipeline_mode = #tpu.pipeline_mode<synchronous>, transform_indices = @transform_1, window_bounds = array<i64: 3, 64>}, {pipeline_mode = #tpu.pipeline_mode<synchronous>, transform_indices = @transform_2, window_bounds = array<i64: 1, 64>}, {pipeline_mode = #tpu.pipeline_mode<synchronous>, transform_indices = @transform_3, window_bounds = array<i64: 64, 128>}, {pipeline_mode = #tpu.pipeline_mode<synchronous>, transform_indices = @transform_4, window_bounds = array<i64: 1, 128>}, {pipeline_mode = #tpu.pipeline_mode<synchronous>, transform_indices = @transform_5, window_bounds = array<i64: 128, 1024>}, {pipeline_mode = #tpu.pipeline_mode<synchronous>, transform_indices = @transform_6, window_bounds = array<i64: 1, 1024>}, {transform_indices = @transform_7, window_bounds = array<i64: 1, 1, 1024>}]} {
    %c0_i32 = arith.constant 0 : i32
    %0 = arith.cmpi eq, %arg1, %c0_i32 : i32
    %1 = arith.extui %0 : i1 to i32
    %c0_i32_0 = arith.constant 0 : i32
    %2 = arith.cmpi ne, %1, %c0_i32_0 : i32
    scf.if %2 {
      %cst_26 = arith.constant 0xFF800000 : f32
      %37 = vector.broadcast %cst_26 : f32 to vector<1x1024xf32>
      %c0_27 = arith.constant 0 : index
      %c0_28 = arith.constant 0 : index
      %38 = vector.load %arg10[%c0_27, %c0_28] : memref<1x1024xf32, #tpu.memory_space<vmem>>, vector<1x1024xf32>
      tpu.vector_store %arg10[%c0_27, %c0_28], %37 {strides = array<i32>} : memref<1x1024xf32, #tpu.memory_space<vmem>>, vector<1x1024xf32>,
    } else {
    }
    %c0 = arith.constant 0 : index
    %c0_1 = arith.constant 0 : index
    %c0_2 = arith.constant 0 : index
    %3 = vector.load %arg2[%c0, %c0_1, %c0_2] : memref<1x128x3xf32, #tpu.memory_space<vmem>>, vector<1x128x3xf32>
    %4 = vector.shape_cast %3 : vector<1x128x3xf32> to vector<128x3xf32>
    %c0_3 = arith.constant 0 : index
    %c0_4 = arith.constant 0 : index
    %5 = vector.load %arg3[%c0_3, %c0_4] : memref<3x64xf32, #tpu.memory_space<vmem>>, vector<3x64xf32>
    %cst = arith.constant dense<0.000000e+00> : vector<128x64xf32>
    %6 = tpu.matmul %4, %5, %cst {dimension_numbers = #tpu.dot_dimension_numbers<[1], [0], [0], [1], [0, 0, 1, 1], [], []>} : vector<128x3xf32>, vector<3x64xf32>, vector<128x64xf32> -> vector<128x64xf32>
    %c0_5 = arith.constant 0 : index
    %c0_6 = arith.constant 0 : index
    %7 = vector.load %arg4[%c0_5, %c0_6] : memref<1x64xf32, #tpu.memory_space<vmem>>, vector<1x64xf32>
    %8 = vector.broadcast %7 : vector<1x64xf32> to vector<128x64xf32>
    %9 = arith.addf %6, %8 : vector<128x64xf32>
    %cst_7 = arith.constant 0.000000e+00 : f32
    %10 = vector.broadcast %cst_7 : f32 to vector<128x64xf32>
    %11 = arith.maximumf %9, %10 : vector<128x64xf32>
    %12 = arith.truncf %11 : vector<128x64xf32> to vector<128x64xbf16>
    %c0_8 = arith.constant 0 : index
    %c0_9 = arith.constant 0 : index
    %13 = vector.load %arg5[%c0_8, %c0_9] : memref<64x128xbf16, #tpu.memory_space<vmem>>, vector<64x128xbf16>
    %cst_10 = arith.constant dense<0.000000e+00> : vector<128x128xf32>
    %14 = tpu.matmul %12, %13, %cst_10 {dimension_numbers = #tpu.dot_dimension_numbers<[1], [0], [0], [1], [0, 0, 1, 1], [], []>} : vector<128x64xbf16>, vector<64x128xbf16>, vector<128x128xf32> -> vector<128x128xf32>
    %c0_11 = arith.constant 0 : index
    %c0_12 = arith.constant 0 : index
    %15 = vector.load %arg6[%c0_11, %c0_12] : memref<1x128xf32, #tpu.memory_space<vmem>>, vector<1x128xf32>
    %16 = vector.broadcast %15 : vector<1x128xf32> to vector<128x128xf32>
    %17 = arith.addf %14, %16 : vector<128x128xf32>
    %cst_13 = arith.constant 0.000000e+00 : f32
    %18 = vector.broadcast %cst_13 : f32 to vector<128x128xf32>
    %19 = arith.maximumf %17, %18 : vector<128x128xf32>
    %20 = arith.truncf %19 : vector<128x128xf32> to vector<128x128xbf16>
    %c0_14 = arith.constant 0 : index
    %c0_15 = arith.constant 0 : index
    %21 = vector.load %arg7[%c0_14, %c0_15] : memref<128x1024xbf16, #tpu.memory_space<vmem>>, vector<128x1024xbf16>
    %cst_16 = arith.constant dense<0.000000e+00> : vector<128x1024xf32>
    %22 = tpu.matmul %20, %21, %cst_16 {dimension_numbers = #tpu.dot_dimension_numbers<[1], [0], [0], [1], [0, 0, 1, 1], [], []>} : vector<128x128xbf16>, vector<128x1024xbf16>, vector<128x1024xf32> -> vector<128x1024xf32>
    %c0_17 = arith.constant 0 : index
    %c0_18 = arith.constant 0 : index
    %23 = vector.load %arg8[%c0_17, %c0_18] : memref<1x1024xf32, #tpu.memory_space<vmem>>, vector<1x1024xf32>
    %24 = vector.broadcast %23 : vector<1x1024xf32> to vector<128x1024xf32>
    %25 = arith.addf %22, %24 : vector<128x1024xf32>
    %cst_19 = arith.constant 0.000000e+00 : f32
    %26 = vector.broadcast %cst_19 : f32 to vector<128x1024xf32>
    %27 = arith.maximumf %25, %26 : vector<128x1024xf32>
    %c0_i32_20 = arith.constant 0 : i32
    %28 = arith.cmpi ne, %arg1, %c0_i32_20 : i32
    %29 = arith.extui %28 : i1 to i32
    %c0_i32_21 = arith.constant 0 : i32
    %30 = arith.cmpi ne, %29, %c0_i32_21 : i32
    scf.if %30 {
      %c0_26 = arith.constant 0 : index
      %c0_27 = arith.constant 0 : index
      %37 = vector.load %arg10[%c0_26, %c0_27] : memref<1x1024xf32, #tpu.memory_space<vmem>>, vector<1x1024xf32>
      %cst_28 = arith.constant dense<0xFF800000> : vector<1024xf32>
      %38 = vector.multi_reduction <maximumf>, %27, %cst_28 [0] : vector<128x1024xf32> to vector<1024xf32>
      %39 = vector.shape_cast %38 : vector<1024xf32> to vector<1x1024xf32>
      %40 = arith.maximumf %37, %39 : vector<1x1024xf32>
      %c0_29 = arith.constant 0 : index
      %c0_30 = arith.constant 0 : index
      %41 = vector.load %arg10[%c0_29, %c0_30] : memref<1x1024xf32, #tpu.memory_space<vmem>>, vector<1x1024xf32>
      tpu.vector_store %arg10[%c0_29, %c0_30], %40 {strides = array<i32>} : memref<1x1024xf32, #tpu.memory_space<vmem>>, vector<1x1024xf32>,
    } else {
    }
    %c0_i32_22 = arith.constant 0 : i32
    %31 = arith.cmpi eq, %arg1, %c0_i32_22 : i32
    %32 = arith.extui %31 : i1 to i32
    %c0_i32_23 = arith.constant 0 : i32
    %33 = arith.cmpi ne, %32, %c0_i32_23 : i32
    scf.if %33 {
      %c128_i32 = arith.constant 128 : i32
      %37 = arith.muli %arg1, %c128_i32 : i32
      %38 = tpu.iota {dimensions = array<i32: 0>} : vector<128x1xi32>
      %39 = vector.broadcast %37 : i32 to vector<128x1xi32>
      %40 = arith.addi %39, %38 : vector<128x1xi32>
      %c16_i32 = arith.constant 16 : i32
      %41 = vector.broadcast %c16_i32 : i32 to vector<128x1xi32>
      %42 = arith.cmpi slt, %40, %41 : vector<128x1xi32>
      %cst_26 = arith.constant 0xFF800000 : f32
      %43 = vector.shape_cast %42 : vector<128x1xi1> to vector<128x1xi1>
      %44 = vector.broadcast %43 : vector<128x1xi1> to vector<128x1024xi1>
      %45 = vector.broadcast %cst_26 : f32 to vector<128x1024xf32>
      %46 = arith.select %44, %27, %45 : vector<128x1024xi1>, vector<128x1024xf32>
      %c0_27 = arith.constant 0 : index
      %c0_28 = arith.constant 0 : index
      %47 = vector.load %arg10[%c0_27, %c0_28] : memref<1x1024xf32, #tpu.memory_space<vmem>>, vector<1x1024xf32>
      %cst_29 = arith.constant dense<0xFF800000> : vector<1024xf32>
      %48 = vector.multi_reduction <maximumf>, %46, %cst_29 [0] : vector<128x1024xf32> to vector<1024xf32>
      %49 = vector.shape_cast %48 : vector<1024xf32> to vector<1x1024xf32>
      %50 = arith.maximumf %47, %49 : vector<1x1024xf32>
      %c0_30 = arith.constant 0 : index
      %c0_31 = arith.constant 0 : index
      %51 = vector.load %arg10[%c0_30, %c0_31] : memref<1x1024xf32, #tpu.memory_space<vmem>>, vector<1x1024xf32>
      tpu.vector_store %arg10[%c0_30, %c0_31], %50 {strides = array<i32>} : memref<1x1024xf32, #tpu.memory_space<vmem>>, vector<1x1024xf32>,
    } else {
    }
    %c0_i32_24 = arith.constant 0 : i32
    %34 = arith.cmpi eq, %arg1, %c0_i32_24 : i32
    %35 = arith.extui %34 : i1 to i32
    %c0_i32_25 = arith.constant 0 : i32
    %36 = arith.cmpi ne, %35, %c0_i32_25 : i32
    scf.if %36 {
      %c0_26 = arith.constant 0 : index
      %c0_27 = arith.constant 0 : index
      %37 = vector.load %arg10[%c0_26, %c0_27] : memref<1x1024xf32, #tpu.memory_space<vmem>>, vector<1x1024xf32>
      %c0_28 = arith.constant 0 : index
      %c0_29 = arith.constant 0 : index
      %c0_30 = arith.constant 0 : index
      %38 = vector.load %arg9[%c0_28, %c0_29, %c0_30] : memref<1x1x1024xf32, #tpu.memory_space<vmem>>, vector<1x1x1024xf32>
      %39 = vector.shape_cast %38 : vector<1x1x1024xf32> to vector<1x1024xf32>
      %40 = vector.shape_cast %37 : vector<1x1024xf32> to vector<1x1x1024xf32>
      tpu.vector_store %arg9[%c0_28, %c0_29, %c0_30], %40 {strides = array<i32>} : memref<1x1x1024xf32, #tpu.memory_space<vmem>>, vector<1x1x1024xf32>,
    } else {
    }
    return
  }
  func.func @transform_0(%arg0: i32, %arg1: i32) -> (i32, i32, i32) {
    %c0_i32 = arith.constant 0 : i32
    %c0_i32_0 = arith.constant 0 : i32
    return %arg0, %arg1, %c0_i32 : i32, i32, i32
  }
  func.func @transform_1(%arg0: i32, %arg1: i32) -> (i32, i32) {
    %c0_i32 = arith.constant 0 : i32
    %c0_i32_0 = arith.constant 0 : i32
    %c0_i32_1 = arith.constant 0 : i32
    return %c0_i32, %c0_i32_0 : i32, i32
  }
  func.func @transform_2(%arg0: i32, %arg1: i32) -> (i32, i32) {
    %c0_i32 = arith.constant 0 : i32
    %c0_i32_0 = arith.constant 0 : i32
    %c0_i32_1 = arith.constant 0 : i32
    return %c0_i32, %c0_i32_0 : i32, i32
  }
  func.func @transform_3(%arg0: i32, %arg1: i32) -> (i32, i32) {
    %c0_i32 = arith.constant 0 : i32
    %c0_i32_0 = arith.constant 0 : i32
    %c0_i32_1 = arith.constant 0 : i32
    return %c0_i32, %c0_i32_0 : i32, i32
  }
  func.func @transform_4(%arg0: i32, %arg1: i32) -> (i32, i32) {
    %c0_i32 = arith.constant 0 : i32
    %c0_i32_0 = arith.constant 0 : i32
    %c0_i32_1 = arith.constant 0 : i32
    return %c0_i32, %c0_i32_0 : i32, i32
  }
  func.func @transform_5(%arg0: i32, %arg1: i32) -> (i32, i32) {
    %c0_i32 = arith.constant 0 : i32
    %c0_i32_0 = arith.constant 0 : i32
    %c0_i32_1 = arith.constant 0 : i32
    return %c0_i32, %c0_i32_0 : i32, i32
  }
  func.func @transform_6(%arg0: i32, %arg1: i32) -> (i32, i32) {
    %c0_i32 = arith.constant 0 : i32
    %c0_i32_0 = arith.constant 0 : i32
    %c0_i32_1 = arith.constant 0 : i32
    return %c0_i32, %c0_i32_0 : i32, i32
  }
  func.func @transform_7(%arg0: i32, %arg1: i32) -> (i32, i32, i32) {
    %c0_i32 = arith.constant 0 : i32
    %c0_i32_0 = arith.constant 0 : i32
    %c0_i32_1 = arith.constant 0 : i32
    return %arg0, %c0_i32, %c0_i32_0 : i32, i32, i32
  }
}

</mosaic_0001>

<llo_original>
// kernel: tpu_custom_call.1
$region0: #{tpu_custom_call.1}
  #allocation0 [shape = 'u32[]', space=smem, size = 0x4, offset = 0x4, fixed_abs, tag = 'smem constant byte address 0x4 - core index']
  #allocation1 [shape = 'u32[144,128]{1,0:T(1,128)}', space=vmem, size = 0x12000, scoped, tag = 'internal scratch']
  #allocation2 [shape = 'f32[1,1024]{1,0:T(1,128)}', space=vmem, size = 0x1000, scoped, tag = 'scratch operand']
  %s0 = inlined_call_operand.vmem [shape: f32[2,128,3], index: 0, kind: input, shape index: {}]
  %s1 = inlined_call_operand.vmem [shape: f32[3,64], index: 1, kind: input, shape index: {}]
  %s2 = inlined_call_operand.vmem [shape: f32[1,64], index: 2, kind: input, shape index: {}]
  %s3 = inlined_call_operand.vmem [shape: bf16[64,128], index: 3, kind: input, shape index: {}]
  %s4 = inlined_call_operand.vmem [shape: f32[1,128], index: 4, kind: input, shape index: {}]
  %s5 = inlined_call_operand.hbm [shape: bf16[128,1024], index: 5, kind: input, shape index: {}]
  %s6 = inlined_call_operand.vmem [shape: f32[1,1024], index: 6, kind: input, shape index: {}]
  %s7 = inlined_call_operand.hbm [shape: f32[2,1,1024], index: 7, kind: output, shape index: {}]
  %s8 = sld [smem:[#allocation0]]
  $region77: #{tpu_custom_call.1} parent=0
    _
  %s10 = ssub.s32 1, %s8
  %s11 = scalar_select 0, %s10, %s8
  $region1: #{tpu_custom_call.1} parent=0
    #allocation3 [shape = 'u8[262144]{0}', space=vmem, size = 0x40000, scoped, tag = 'input window, operand 5, single buffered']
    #allocation4 [shape = 's32[2]{0}', space=sflag, size = 0x8, scoped, tag = 'scoped memory for tpu_custom_call.1']
    #allocation5 [shape = 's32[2]{0}', space=sflag, size = 0x8, scoped, tag = 'scoped memory for tpu_custom_call.1']
    #allocation6 [shape = 'u8[8192]{0}', space=vmem, size = 0x2000, scoped, tag = 'output window, operand 0']
    %12 = vsyncpa [#allocation4], 0
    %13 = vsyncpa [#allocation5], 0
    %s14 = scalar_lea.sflag [#allocation5], 1
    %15 = vsyncpa %s14, 0
    loop: start=0, step=1, limit=4
    $region2: #{tpu_custom_call.1} parent=1 // loop_pre_header
      _
    $region3: #{tpu_custom_call.1} parent=1 // loop_header
      %s17 = sphi 0, %s21
      %p18 = scmp.ge.s32.totalorder %s17, 4
      %s24 = sphi 0, %s36
      %s25 = sphi 0, %s32
      %s26 = sphi 0, %s24
      %s27 = sphi 0, %s25
      %s28 = sphi 0, %s26
      %s29 = sphi 0, %s27
      %s41 = sphi 0, %s43
      %s44 = sphi 0, %s41
      %s45 = sphi 0, %s44
      %s61 = sphi 0, %s45
      %s65 = sphi 0, %s65
      %s67 = sphi 0, %s65
      %s68 = sphi 0, %s67
      %s82 = sphi 0, %s68
      %s86 = sphi 0, %s86
      %s88 = sphi 0, %s86
      %s89 = sphi 0, %s88
      %s103 = sphi 0, %s89
      %s107 = sphi 0, %s107
      %s109 = sphi 0, %s107
      %s110 = sphi 0, %s109
      %s124 = sphi 0, %s110
      %s128 = sphi 0, %s128
      %s130 = sphi 0, %s128
      %s131 = sphi 0, %s130
      %s145 = sphi 0, %s131
      %s149 = sphi 0, %s149
      %s151 = sphi 0, %s149
      %s152 = sphi 0, %s151
      %s166 = sphi 0, %s152
      %s170 = sphi 0, %s170
      %s172 = sphi 0, %s170
      %s173 = sphi 0, %s172
      %s187 = sphi 0, %s173
      %s193 = sphi 0, %s195
      %s196 = sphi 0, %s193
      %s197 = sphi 0, %s196
      %s213 = sphi 0, %s197
    $region4: #{tpu_custom_call.1} parent=1 // loop_header_branch
      %20 = sbr.rel (%p18) target = $region8
    $region5: #{tpu_custom_call.1} parent=1 // loop_body
      %s22 = ssub.s32 %s17, 1
      %s23 = ssub.s32 %s17, 2
      %s30 = sadd.s32 1, %s25
      %p31 = scmp.ge.s32.totalorder %s30, 1
      %s32 = scalar_select %p31, 0, %s30
      %s33 = sadd.s32 1, %s24
      %s34 = scalar_select %p31, %s33, %s24
      %p35 = scmp.ge.s32.totalorder %s34, 2
      %s36 = scalar_select %p35, 0, %s34
      %s37 = ssub.s32 %s24, %s36
      %s38 = ssub.s32 %s25, %s32
      %s39 = sor.u32 %s37, %s38
      %p40 = scmp.eq.s32.totalorder %s39, 0
      %s42 = sadd.s32 %s41, 1
      %s43 = scalar_select %p40, %s41, %s42
      %p46 = pneg %p40
      %p47 = scmp.eq.s32.totalorder %s17, 1
      %p48 = por %p46, %p47
      %p49 = scmp.ne.s32.totalorder %s41, %s44
      %p50 = scmp.eq.s32.totalorder %s17, 0
      %p51 = por %p49, %p50
      %p52 = scmp.ne.s32.totalorder %s41, %s44
      %p53 = scmp.eq.s32.totalorder %s22, 1
      %p54 = por %p52, %p53
      %p55 = scmp.ne.s32.totalorder %s44, %s45
      %p56 = scmp.eq.s32.totalorder %s22, 0
      %p57 = por %p55, %p56
      %p58 = scmp.ne.s32.totalorder %s44, %s45
      %p59 = scmp.eq.s32.totalorder %s23, 1
      %p60 = por %p58, %p59
      %p62 = scmp.ne.s32.totalorder %s45, %s61
      %p63 = scmp.eq.s32.totalorder %s23, 0
      %p64 = por %p62, %p63
      %s66 = sadd.s32 %s65, 1
      %p69 = scmp.eq.s32.totalorder %s17, 1
      %p70 = scmp.ne.s32.totalorder %s65, %s67
      %p71 = scmp.eq.s32.totalorder %s17, 0
      %p72 = por %p70, %p71
      %p73 = scmp.ne.s32.totalorder %s65, %s67
      %p74 = scmp.eq.s32.totalorder %s22, 1
      %p75 = por %p73, %p74
      %p76 = scmp.ne.s32.totalorder %s67, %s68
      %p77 = scmp.eq.s32.totalorder %s22, 0
      %p78 = por %p76, %p77
      %p79 = scmp.ne.s32.totalorder %s67, %s68
      %p80 = scmp.eq.s32.totalorder %s23, 1
      %p81 = por %p79, %p80
      %p83 = scmp.ne.s32.totalorder %s68, %s82
      %p84 = scmp.eq.s32.totalorder %s23, 0
      %p85 = por %p83, %p84
      %s87 = sadd.s32 %s86, 1
      %p90 = scmp.eq.s32.totalorder %s17, 1
      %p91 = scmp.ne.s32.totalorder %s86, %s88
      %p92 = scmp.eq.s32.totalorder %s17, 0
      %p93 = por %p91, %p92
      %p94 = scmp.ne.s32.totalorder %s86, %s88
      %p95 = scmp.eq.s32.totalorder %s22, 1
      %p96 = por %p94, %p95
      %p97 = scmp.ne.s32.totalorder %s88, %s89
      %p98 = scmp.eq.s32.totalorder %s22, 0
      %p99 = por %p97, %p98
      %p100 = scmp.ne.s32.totalorder %s88, %s89
      %p101 = scmp.eq.s32.totalorder %s23, 1
      %p102 = por %p100, %p101
      %p104 = scmp.ne.s32.totalorder %s89, %s103
      %p105 = scmp.eq.s32.totalorder %s23, 0
      %p106 = por %p104, %p105
      %s108 = sadd.s32 %s107, 1
      %p111 = scmp.eq.s32.totalorder %s17, 1
      %p112 = scmp.ne.s32.totalorder %s107, %s109
      %p113 = scmp.eq.s32.totalorder %s17, 0
      %p114 = por %p112, %p113
      %p115 = scmp.ne.s32.totalorder %s107, %s109
      %p116 = scmp.eq.s32.totalorder %s22, 1
      %p117 = por %p115, %p116
      %p118 = scmp.ne.s32.totalorder %s109, %s110
      %p119 = scmp.eq.s32.totalorder %s22, 0
      %p120 = por %p118, %p119
      %p121 = scmp.ne.s32.totalorder %s109, %s110
      %p122 = scmp.eq.s32.totalorder %s23, 1
      %p123 = por %p121, %p122
      %p125 = scmp.ne.s32.totalorder %s110, %s124
      %p126 = scmp.eq.s32.totalorder %s23, 0
      %p127 = por %p125, %p126
      %s129 = sadd.s32 %s128, 1
      %p132 = scmp.eq.s32.totalorder %s17, 1
      %p133 = scmp.ne.s32.totalorder %s128, %s130
      %p134 = scmp.eq.s32.totalorder %s17, 0
      %p135 = por %p133, %p134
      %p136 = scmp.ne.s32.totalorder %s128, %s130
      %p137 = scmp.eq.s32.totalorder %s22, 1
      %p138 = por %p136, %p137
      %p139 = scmp.ne.s32.totalorder %s130, %s131
      %p140 = scmp.eq.s32.totalorder %s22, 0
      %p141 = por %p139, %p140
      %p142 = scmp.ne.s32.totalorder %s130, %s131
      %p143 = scmp.eq.s32.totalorder %s23, 1
      %p144 = por %p142, %p143
      %p146 = scmp.ne.s32.totalorder %s131, %s145
      %p147 = scmp.eq.s32.totalorder %s23, 0
      %p148 = por %p146, %p147
      %s150 = sadd.s32 %s149, 1
      %p153 = scmp.eq.s32.totalorder %s17, 1
      %p154 = scmp.ne.s32.totalorder %s149, %s151
      %p155 = scmp.eq.s32.totalorder %s17, 0
      %p156 = por %p154, %p155
      %p157 = scmp.ne.s32.totalorder %s149, %s151
      %p158 = scmp.eq.s32.totalorder %s22, 1
      %p159 = por %p157, %p158
      %p160 = scmp.ne.s32.totalorder %s151, %s152
      %p161 = scmp.eq.s32.totalorder %s22, 0
      %p162 = por %p160, %p161
      %p163 = scmp.ne.s32.totalorder %s151, %s152
      %p164 = scmp.eq.s32.totalorder %s23, 1
      %p165 = por %p163, %p164
      %p167 = scmp.ne.s32.totalorder %s152, %s166
      %p168 = scmp.eq.s32.totalorder %s23, 0
      %p169 = por %p167, %p168
      %s171 = sadd.s32 %s170, 1
      %p174 = scmp.eq.s32.totalorder %s17, 1
      %p175 = scmp.ne.s32.totalorder %s170, %s172
      %p176 = scmp.eq.s32.totalorder %s17, 0
      %p177 = por %p175, %p176
      %p178 = scmp.ne.s32.totalorder %s170, %s172
      %p179 = scmp.eq.s32.totalorder %s22, 1
      %p180 = por %p178, %p179
      %p181 = scmp.ne.s32.totalorder %s172, %s173
      %p182 = scmp.eq.s32.totalorder %s22, 0
      %p183 = por %p181, %p182
      %p184 = scmp.ne.s32.totalorder %s172, %s173
      %p185 = scmp.eq.s32.totalorder %s23, 1
      %p186 = por %p184, %p185
      %p188 = scmp.ne.s32.totalorder %s173, %s187
      %p189 = scmp.eq.s32.totalorder %s23, 0
      %p190 = por %p188, %p189
      %s191 = ssub.s32 %s24, %s36
      %p192 = scmp.eq.s32.totalorder %s191, 0
      %s194 = sadd.s32 %s193, 1
      %s195 = scalar_select %p192, %s193, %s194
      %p198 = pneg %p192
      %p199 = scmp.eq.s32.totalorder %s17, 1
      %p200 = por %p198, %p199
      %p201 = scmp.ne.s32.totalorder %s193, %s196
      %p202 = scmp.eq.s32.totalorder %s17, 0
      %p203 = por %p201, %p202
      %p204 = scmp.ne.s32.totalorder %s193, %s196
      %p205 = scmp.eq.s32.totalorder %s22, 1
      %p206 = por %p204, %p205
      %p207 = scmp.ne.s32.totalorder %s196, %s197
      %p208 = scmp.eq.s32.totalorder %s22, 0
      %p209 = por %p207, %p208
      %p210 = scmp.ne.s32.totalorder %s196, %s197
      %p211 = scmp.eq.s32.totalorder %s23, 1
      %p212 = por %p210, %p211
      %p214 = scmp.ne.s32.totalorder %s197, %s213
      %p215 = scmp.eq.s32.totalorder %s23, 0
      %p216 = por %p214, %p215
      %p217 = scmp.le.s32.totalorder 1, %s17
      %p218 = scmp.lt.s32.totalorder %s17, 3
      %p219 = pnand %p217, %p218
      %p220 = pneg %p219
      // Predicated region
      $region9: #{tpu_custom_call.1} parent=5 // pred_check
        _
      $region10: #{tpu_custom_call.1} parent=5 // pred_check_branch
        %222 = sbr.rel (%p219) target = $region12
      $region11: #{tpu_custom_call.1} parent=5 // pred_region
        %s223 = ssub.s32 %s17, 1
        // Predicated region
        $region13: #{tpu_custom_call.1} parent=11 // pred_check
          %p224 = pneg %p78
        $region14: #{tpu_custom_call.1} parent=11 // pred_check_branch
          %226 = sbr.rel (%p224) target = $region16
        $region15: #{tpu_custom_call.1} parent=11 // pred_region
          _
        $region16: #{tpu_custom_call.1} parent=11 // pred_fallthru
          _
        // Predicated region
        $region17: #{tpu_custom_call.1} parent=11 // pred_check
          %p227 = pneg %p99
        $region18: #{tpu_custom_call.1} parent=11 // pred_check_branch
          %229 = sbr.rel (%p227) target = $region20
        $region19: #{tpu_custom_call.1} parent=11 // pred_region
          _
        $region20: #{tpu_custom_call.1} parent=11 // pred_fallthru
          _
        // Predicated region
        $region21: #{tpu_custom_call.1} parent=11 // pred_check
          %p230 = pneg %p120
        $region22: #{tpu_custom_call.1} parent=11 // pred_check_branch
          %232 = sbr.rel (%p230) target = $region24
        $region23: #{tpu_custom_call.1} parent=11 // pred_region
          _
        $region24: #{tpu_custom_call.1} parent=11 // pred_fallthru
          _
        // Predicated region
        $region25: #{tpu_custom_call.1} parent=11 // pred_check
          %p233 = pneg %p141
        $region26: #{tpu_custom_call.1} parent=11 // pred_check_branch
          %235 = sbr.rel (%p233) target = $region28
        $region27: #{tpu_custom_call.1} parent=11 // pred_region
          _
        $region28: #{tpu_custom_call.1} parent=11 // pred_fallthru
          _
        // Predicated region
        $region29: #{tpu_custom_call.1} parent=11 // pred_check
          %p236 = pneg %p162
        $region30: #{tpu_custom_call.1} parent=11 // pred_check_branch
          %238 = sbr.rel (%p236) target = $region32
        $region31: #{tpu_custom_call.1} parent=11 // pred_region
          %s240 = ssub.s32 8192, 8192
          %241 = vsyncadd [#allocation4], %s240
          %s242 = sshll.u32 [#allocation3], 4
          %s243 = int_to_ptr.vmem [resolvable:$true] %s242
          %248 = dma.hbm_to_vmem [thread:$0]  %s5, 8192, %s243, [#allocation4], 512, 512, 32
        $region32: #{tpu_custom_call.1} parent=11 // pred_fallthru
          _
        // Predicated region
        $region33: #{tpu_custom_call.1} parent=11 // pred_check
          %p249 = pneg %p183
        $region34: #{tpu_custom_call.1} parent=11 // pred_check_branch
          %251 = sbr.rel (%p249) target = $region36
        $region35: #{tpu_custom_call.1} parent=11 // pred_region
          _
        $region36: #{tpu_custom_call.1} parent=11 // pred_fallthru
          _
      $region12: #{tpu_custom_call.1} parent=5 // pred_fallthru
        _
      %p252 = scmp.lt.s32.totalorder %s17, 2
      // Predicated region
      $region37: #{tpu_custom_call.1} parent=5 // pred_check
        %p253 = pneg %p252
      $region38: #{tpu_custom_call.1} parent=5 // pred_check_branch
        %255 = sbr.rel (%p253) target = $region40
      $region39: #{tpu_custom_call.1} parent=5 // pred_region
        // Predicated region
        $region41: #{tpu_custom_call.1} parent=39 // pred_check
          %p256 = pneg %p51
        $region42: #{tpu_custom_call.1} parent=39 // pred_check_branch
          %258 = sbr.rel (%p256) target = $region44
        $region43: #{tpu_custom_call.1} parent=39 // pred_region
          %s259 = smul.u32 16, %s25
          %p260 = scmp.lt.s32.totalorder %s24, 1
          %s261 = scalar_select %p260, %s24, 1
          %p262 = scmp.lt.s32.totalorder %s259, 15
          %s263 = scalar_select %p262, %s259, 15
          %s264 = smul.addr %s261, 16
          %s265 = sadd.s32 %s263, %s264
          %s266 = smul.addr %s265, 8
          %s267 = scalar_lea.vmem %s0, %s266
          %s268 = smul.u32 16, %s25
        $region44: #{tpu_custom_call.1} parent=39 // pred_fallthru
          _
      $region40: #{tpu_custom_call.1} parent=5 // pred_fallthru
        _
      %p269 = scmp.le.s32.totalorder 1, %s17
      %p270 = scmp.lt.s32.totalorder %s17, 3
      %p271 = pnand %p269, %p270
      %p272 = pneg %p271
      // Predicated region
      $region45: #{tpu_custom_call.1} parent=5 // pred_check
        _
      $region46: #{tpu_custom_call.1} parent=5 // pred_check_branch
        %274 = sbr.rel (%p271) target = $region48
      $region47: #{tpu_custom_call.1} parent=5 // pred_region
        %s275 = ssub.s32 %s17, 1
        // Predicated region
        $region49: #{tpu_custom_call.1} parent=47 // pred_check
          %p276 = pneg %p162
        $region50: #{tpu_custom_call.1} parent=47 // pred_check_branch
          %278 = sbr.rel (%p276) target = $region52
        $region51: #{tpu_custom_call.1} parent=47 // pred_region
          %279 = dma.done [#allocation4], 8192
        $region52: #{tpu_custom_call.1} parent=47 // pred_fallthru
          _
        %s280 = smul.u32 16, %s27
        %p281 = scmp.lt.s32.totalorder %s26, 1
        %s282 = scalar_select %p281, %s26, 1
        %p283 = scmp.lt.s32.totalorder %s280, 15
        %s284 = scalar_select %p283, %s280, 15
        %s285 = smul.addr %s282, 16
        %s286 = sadd.s32 %s284, %s285
        %s287 = smul.addr %s286, 8
        %s288 = scalar_lea.vmem %s0, %s287
        %p289 = pneg %p57
        %p290 = pneg %p54
        %p291 = pneg %p78
        %p292 = pneg %p75
        %p293 = pneg %p99
        %p294 = pneg %p96
        %p295 = pneg %p120
        %p296 = pneg %p117
        %p297 = pneg %p141
        %p298 = pneg %p138
        %p299 = pneg %p162
        %p300 = pneg %p159
        %p301 = pneg %p183
        %p302 = pneg %p180
        %p303 = pneg %p209
        %p304 = pneg %p206
        %s305 = sand.u32 %s196, 1
        %s306 = scalar_lea.sflag [#allocation5], %s305
        %s307 = sand.u32 %s196, 1
        %s308 = smul.addr %s307, 8
        %s309 = scalar_lea.vmem [#allocation6], %s308
        %s310 = smul.u32 16, %s27
        %p311 = scmp.lt.s32.totalorder %s26, 1
        %s312 = scalar_select %p311, %s26, 1
        %p313 = scmp.lt.s32.totalorder %s310, 15
        %s314 = scalar_select %p313, %s310, 15
        %s315 = smul.addr %s312, 16
        %s316 = sadd.s32 %s314, %s315
        %s317 = smul.addr %s316, 8
        %s318 = scalar_lea.vmem %s0, %s317
        %s319 = smul.u32 16, %s27
        %p321 = scmp.eq.s32.totalorder %s27, 0
        // Predicated region
        $region53: #{tpu_custom_call.1} parent=47 // pred_check
          %p322 = pneg %p321
        $region54: #{tpu_custom_call.1} parent=47 // pred_check_branch
          %324 = sbr.rel (%p322) target = $region56
        $region55: #{tpu_custom_call.1} parent=47 // pred_region
          %325 = vst [vmem:[#allocation2] sm:$0xff] -inf
        $region56: #{tpu_custom_call.1} parent=47 // pred_fallthru
          _
        %v326 = vld [vmem:[%s318] sm:$0xff]
        %v327 = vld [vmem:[%s318 + $0x8] sm:$0xff]
        %v328 = vld [vmem:[%s318 + $0x10] sm:$0xff]
        %v329 = vld [vmem:[%s318 + $0x18] sm:$0xff]
        %v330 = vld [vmem:[%s318 + $0x20] sm:$0xff]
        %v331 = vld [vmem:[%s318 + $0x28] sm:$0xff]
        %v332 = vld [vmem:[%s318 + $0x30] sm:$0xff]
        %v333 = vld [vmem:[%s318 + $0x38] sm:$0xff]
        %v334 = vld [vmem:[%s318 + $0x40] sm:$0xff]
        %v335 = vld [vmem:[%s318 + $0x48] sm:$0xff]
        %v336 = vld [vmem:[%s318 + $0x50] sm:$0xff]
        %v337 = vld [vmem:[%s318 + $0x58] sm:$0xff]
        %v338 = vld [vmem:[%s318 + $0x60] sm:$0xff]
        %v339 = vld [vmem:[%s318 + $0x68] sm:$0xff]
        %v340 = vld [vmem:[%s318 + $0x70] sm:$0xff]
        %v341 = vld [vmem:[%s318 + $0x78] sm:$0xff]
        %v342 = vld [vmem:[%s1] sm:$0x7]
        %v343 = vld [vmem:[%s2] sm:$0x1]
        %v345 = vlaneseq
        %v346 = vshrl.u32 %v345, 7
        %v347 = vsub.s32 0, %v346
        %v348 = vrot.slane %v343, %v347
        %vm350 = vcmask 23552
        %v352 = vsel %vm350, %v326, 0
        %v355 = vsel %vm350, %v327, 0
        %v358 = vsel %vm350, %v328, 0
        %v361 = vsel %vm350, %v329, 0
        %v364 = vsel %vm350, %v330, 0
        %v367 = vsel %vm350, %v331, 0
        %v370 = vsel %vm350, %v332, 0
        %v373 = vsel %vm350, %v333, 0
        %v376 = vsel %vm350, %v334, 0
        %v379 = vsel %vm350, %v335, 0
        %v382 = vsel %vm350, %v336, 0
        %v385 = vsel %vm350, %v337, 0
        %v388 = vsel %vm350, %v338, 0
        %v391 = vsel %vm350, %v339, 0
        %v394 = vsel %vm350, %v340, 0
        %v397 = vsel %vm350, %v341, 0
        %vm399 = vcmask 1042432
        %v401 = vsel %vm399, %v342, 0
        %403 = vmatprep.subr.mxu0 0.0
        %404 = vmatpush1.msra.mxu0 %v401
        %405 = vmatprep.subr.mxu0 0.0
        %406 = vmatpush1.msra.mxu0 0.0
        %407 = vmatprep.subr.mxu0 0.0
        %408 = vmatpush1.msra.mxu0 0.0
        %409 = vmatprep.subr.mxu0 0.0
        %410 = vmatpush1.msra.mxu0 0.0
        %411 = vmatprep.subr.mxu0 0.0
        %412 = vmatpush1.msra.mxu0 0.0
        %413 = vmatprep.subr.mxu0 0.0
        %414 = vmatpush1.msra.mxu0 0.0
        %415 = vmatprep.subr.mxu0 0.0
        %416 = vmatpush1.msra.mxu0 0.0
        %417 = vmatprep.subr.mxu0 0.0
        %418 = vmatpush1.msra.mxu0 0.0
        %419 = vmatprep.subr.mxu0 0.0
        %420 = vmatpush1.msra.mxu0 0.0
        %421 = vmatprep.subr.mxu0 0.0
        %422 = vmatpush1.msra.mxu0 0.0
        %423 = vmatprep.subr.mxu0 0.0
        %424 = vmatpush1.msra.mxu0 0.0
        %425 = vmatprep.subr.mxu0 0.0
        %426 = vmatpush1.msra.mxu0 0.0
        %427 = vmatprep.subr.mxu0 0.0
        %428 = vmatpush1.msra.mxu0 0.0
        %429 = vmatprep.subr.mxu0 0.0
        %430 = vmatpush1.msra.mxu0 0.0
        %431 = vmatprep.subr.mxu0 0.0
        %432 = vmatpush1.msra.mxu0 0.0
        %433 = vmatprep.subr.mxu0 0.0
        %434 = vmatpush1.msra.mxu0 0.0
        %435 = vmatprep.subr.mxu0 0.0
        %436 = vmatpush1.msra.mxu0 0.0
        %437 = vmatprep.subr.mxu0 0.0
        %438 = vmatpush1.msra.mxu0 0.0
        %439 = vmatprep.subr.mxu0 0.0
        %440 = vmatpush1.msra.mxu0 0.0
        %441 = vmatprep.subr.mxu0 0.0
        %442 = vmatpush1.msra.mxu0 0.0
        %443 = vmatprep.subr.mxu0 0.0
        %444 = vmatpush1.msra.mxu0 0.0
        %445 = vmatprep.subr.mxu0 0.0
        %446 = vmatpush1.msra.mxu0 0.0
        %447 = vmatprep.subr.mxu0 0.0
        %448 = vmatpush1.msra.mxu0 0.0
        %449 = vmatprep.subr.mxu0 0.0
        %450 = vmatpush1.msra.mxu0 0.0
        %451 = vmatprep.subr.mxu0 0.0
        %452 = vmatpush1.msra.mxu0 0.0
        %453 = vmatprep.subr.mxu0 0.0
        %454 = vmatpush1.msra.mxu0 0.0
        %455 = vmatprep.subr.mxu0 0.0
        %456 = vmatpush1.msra.mxu0 0.0
        %457 = vmatprep.subr.mxu0 0.0
        %458 = vmatpush1.msra.mxu0 0.0
        %459 = vmatprep.subr.mxu0 0.0
        %460 = vmatpush1.msra.mxu0 0.0
        %461 = vmatprep.subr.mxu0 0.0
        %462 = vmatpush1.msra.mxu0 0.0
        %463 = vmatprep.subr.mxu0 0.0
        %464 = vmatpush1.msra.mxu0 0.0
        %465 = vmatprep.subr.mxu0 0.0
        %466 = vmatpush1.msra.mxu0 0.0
        %467 = vmatprep.mubr.f32.mxu0 0.0
        %468 = vmatmul.mubr.f32.gmra.mrb[0].mxu0 %v352
        %v469 = vpop.f32.mrb[0].mxu0
        %v470 = vadd.f32 %v348, %v469
        %v471 = vpop.f32.mrb[0].mxu0
        %472 = vmatprep.mubr.f32.mxu0 0.0
        %473 = vmatmul.mubr.f32.gmra.mrb[0].mxu0 %v355
        %v474 = vpop.f32.mrb[0].mxu0
        %v475 = vadd.f32 %v348, %v474
        %v476 = vpop.f32.mrb[0].mxu0
        %477 = vmatprep.mubr.f32.mxu0 0.0
        %478 = vmatmul.mubr.f32.gmra.mrb[0].mxu0 %v358
        %v479 = vpop.f32.mrb[0].mxu0
        %v480 = vadd.f32 %v348, %v479
        %v481 = vpop.f32.mrb[0].mxu0
        %482 = vmatprep.mubr.f32.mxu0 0.0
        %483 = vmatmul.mubr.f32.gmra.mrb[0].mxu0 %v361
        %v484 = vpop.f32.mrb[0].mxu0
        %v485 = vadd.f32 %v348, %v484
        %v486 = vpop.f32.mrb[0].mxu0
        %487 = vmatprep.mubr.f32.mxu0 0.0
        %488 = vmatmul.mubr.f32.gmra.mrb[0].mxu0 %v364
        %v489 = vpop.f32.mrb[0].mxu0
        %v490 = vadd.f32 %v348, %v489
        %v491 = vpop.f32.mrb[0].mxu0
        %492 = vmatprep.mubr.f32.mxu0 0.0
        %493 = vmatmul.mubr.f32.gmra.mrb[0].mxu0 %v367
        %v494 = vpop.f32.mrb[0].mxu0
        %v495 = vadd.f32 %v348, %v494
        %v496 = vpop.f32.mrb[0].mxu0
        %497 = vmatprep.mubr.f32.mxu0 0.0
        %498 = vmatmul.mubr.f32.gmra.mrb[0].mxu0 %v370
        %v499 = vpop.f32.mrb[0].mxu0
        %v500 = vadd.f32 %v348, %v499
        %v501 = vpop.f32.mrb[0].mxu0
        %502 = vmatprep.mubr.f32.mxu0 0.0
        %503 = vmatmul.mubr.f32.gmra.mrb[0].mxu0 %v373
        %v504 = vpop.f32.mrb[0].mxu0
        %v505 = vadd.f32 %v348, %v504
        %v506 = vpop.f32.mrb[0].mxu0
        %507 = vmatprep.mubr.f32.mxu0 0.0
        %508 = vmatmul.mubr.f32.gmra.mrb[0].mxu0 %v376
        %v509 = vpop.f32.mrb[0].mxu0
        %v510 = vadd.f32 %v348, %v509
        %v511 = vpop.f32.mrb[0].mxu0
        %512 = vmatprep.mubr.f32.mxu0 0.0
        %513 = vmatmul.mubr.f32.gmra.mrb[0].mxu0 %v379
        %v514 = vpop.f32.mrb[0].mxu0
        %v515 = vadd.f32 %v348, %v514
        %v516 = vpop.f32.mrb[0].mxu0
        %517 = vmatprep.mubr.f32.mxu0 0.0
        %518 = vmatmul.mubr.f32.gmra.mrb[0].mxu0 %v382
        %v519 = vpop.f32.mrb[0].mxu0
        %v520 = vadd.f32 %v348, %v519
        %v521 = vpop.f32.mrb[0].mxu0
        %522 = vmatprep.mubr.f32.mxu0 0.0
        %523 = vmatmul.mubr.f32.gmra.mrb[0].mxu0 %v385
        %v524 = vpop.f32.mrb[0].mxu0
        %v525 = vadd.f32 %v348, %v524
        %v526 = vpop.f32.mrb[0].mxu0
        %527 = vmatprep.mubr.f32.mxu0 0.0
        %528 = vmatmul.mubr.f32.gmra.mrb[0].mxu0 %v388
        %v529 = vpop.f32.mrb[0].mxu0
        %v530 = vadd.f32 %v348, %v529
        %v531 = vpop.f32.mrb[0].mxu0
        %532 = vmatprep.mubr.f32.mxu0 0.0
        %533 = vmatmul.mubr.f32.gmra.mrb[0].mxu0 %v391
        %v534 = vpop.f32.mrb[0].mxu0
        %v535 = vadd.f32 %v348, %v534
        %v536 = vpop.f32.mrb[0].mxu0
        %537 = vmatprep.mubr.f32.mxu0 0.0
        %538 = vmatmul.mubr.f32.gmra.mrb[0].mxu0 %v394
        %v539 = vpop.f32.mrb[0].mxu0
        %v540 = vadd.f32 %v348, %v539
        %v541 = vpop.f32.mrb[0].mxu0
        %542 = vmatprep.mubr.f32.mxu0 0.0
        %543 = vmatmul.mubr.f32.gmra.mrb[0].mxu0 %v397
        %v544 = vpop.f32.mrb[0].mxu0
        %v545 = vadd.f32 %v348, %v544
        %v546 = vpop.f32.mrb[0].mxu0
        %547 = vdwg.mxu0
        %v548 = vmax.f32 %v470, 0.0
        %v549 = vmax.f32 %v475, 0.0
        %v550 = vmax.f32 %v480, 0.0
        %v551 = vmax.f32 %v485, 0.0
        %v552 = vmax.f32 %v490, 0.0
        %v553 = vmax.f32 %v495, 0.0
        %v554 = vmax.f32 %v500, 0.0
        %v555 = vmax.f32 %v505, 0.0
        %v556 = vmax.f32 %v510, 0.0
        %v557 = vmax.f32 %v515, 0.0
        %v558 = vmax.f32 %v520, 0.0
        %v559 = vmax.f32 %v525, 0.0
        %v560 = vmax.f32 %v530, 0.0
        %v561 = vmax.f32 %v535, 0.0
        %v562 = vmax.f32 %v540, 0.0
        %v563 = vmax.f32 %v545, 0.0
        %v564 = vpack.c.bf16 %v549, %v548
        %v565 = vpack.c.bf16 %v551, %v550
        %v566 = vpack.c.bf16 %v553, %v552
        %v567 = vpack.c.bf16 %v555, %v554
        %v568 = vpack.c.bf16 %v557, %v556
        %v569 = vpack.c.bf16 %v559, %v558
        %v570 = vpack.c.bf16 %v561, %v560
        %v571 = vpack.c.bf16 %v563, %v562
        %v572 = vld [vmem:[%s3] sm:$0xf]
        %v573 = vld [vmem:[%s3 + $0x4] sm:$0xf]
        %v574 = vld [vmem:[%s3 + $0x8] sm:$0xf]
        %v575 = vld [vmem:[%s3 + $0xc] sm:$0xf]
        %v576 = vld [vmem:[%s3 + $0x10] sm:$0xf]
        %v577 = vld [vmem:[%s3 + $0x14] sm:$0xf]
        %v578 = vld [vmem:[%s3 + $0x18] sm:$0xf]
        %v579 = vld [vmem:[%s3 + $0x1c] sm:$0xf]
        %v580 = vld [vmem:[%s4] sm:$0x1]
        %v582 = vlaneseq
        %v583 = vshrl.u32 %v582, 7
        %v584 = vsub.s32 0, %v583
        %v585 = vrot.slane %v580, %v584
        %v595 = vunpack.c.l.b16 %v572
        %v596 = vunpack.c.l.b16 %v573
        %v597 = vunpack.c.l.b16 %v574
        %v598 = vunpack.c.l.b16 %v575
        %v599 = vunpack.c.l.b16 %v576
        %v600 = vunpack.c.l.b16 %v577
        %v601 = vunpack.c.l.b16 %v578
        %v602 = vunpack.c.l.b16 %v579
        %v603 = vpack.c.b16 %v596, %v595
        %v604 = vpack.c.b16 %v598, %v597
        %v605 = vpack.c.b16 %v600, %v599
        %v606 = vpack.c.b16 %v602, %v601
        %vm611 = vcmask 523264
        %v613 = vsel %vm611, %v564, 0
        %v616 = vsel %vm611, %v565, 0
        %v619 = vsel %vm611, %v566, 0
        %v622 = vsel %vm611, %v567, 0
        %v625 = vsel %vm611, %v568, 0
        %v628 = vsel %vm611, %v569, 0
        %v631 = vsel %vm611, %v570, 0
        %v634 = vsel %vm611, %v571, 0
        %636 = vmatprep.subr.bf16.mxu0 0
        %637 = vmatpush1.bf16.msra.mxu0 %v603
        %638 = vmatprep.subr.bf16.mxu0 0
        %639 = vmatpush1.bf16.msra.mxu0 %v604
        %640 = vmatprep.subr.bf16.mxu0 0
        %641 = vmatpush1.bf16.msra.mxu0 %v605
        %642 = vmatprep.subr.bf16.mxu0 0
        %643 = vmatpush1.bf16.msra.mxu0 %v606
        %644 = vmatprep.subr.bf16.mxu0 0
        %645 = vmatpush1.bf16.msra.mxu0 0
        %646 = vmatprep.subr.bf16.mxu0 0
        %647 = vmatpush1.bf16.msra.mxu0 0
        %648 = vmatprep.subr.bf16.mxu0 0
        %649 = vmatpush1.bf16.msra.mxu0 0
        %650 = vmatprep.subr.bf16.mxu0 0
        %651 = vmatpush1.bf16.msra.mxu0 0
        %652 = vmatprep.subr.bf16.mxu0 0
        %653 = vmatpush1.bf16.msra.mxu0 0
        %654 = vmatprep.subr.bf16.mxu0 0
        %655 = vmatpush1.bf16.msra.mxu0 0
        %656 = vmatprep.subr.bf16.mxu0 0
        %657 = vmatpush1.bf16.msra.mxu0 0
        %658 = vmatprep.subr.bf16.mxu0 0
        %659 = vmatpush1.bf16.msra.mxu0 0
        %660 = vmatprep.subr.bf16.mxu0 0
        %661 = vmatpush1.bf16.msra.mxu0 0
        %662 = vmatprep.subr.bf16.mxu0 0
        %663 = vmatpush1.bf16.msra.mxu0 0
        %664 = vmatprep.subr.bf16.mxu0 0
        %665 = vmatpush1.bf16.msra.mxu0 0
        %666 = vmatprep.subr.bf16.mxu0 0
        %667 = vmatpush1.bf16.msra.mxu0 0
        %668 = vmatprep.mubr.bf16.mxu0 0
        %669 = vmatmul.mubr.bf16.gmra.mrb[0].mxu0 %v613
        %v670 = vpop.f32.mrb[0].mxu0
        %v671 = vadd.f32 %v585, %v670
        %v672 = vpop.f32.mrb[0].mxu0
        %v673 = vpop.f32.mrb[0].mxu0
        %v674 = vadd.f32 %v585, %v673
        %v675 = vpop.f32.mrb[0].mxu0
        %676 = vmatprep.mubr.bf16.mxu0 0
        %677 = vmatmul.mubr.bf16.gmra.mrb[0].mxu0 %v616
        %v678 = vpop.f32.mrb[0].mxu0
        %v679 = vadd.f32 %v585, %v678
        %v680 = vpop.f32.mrb[0].mxu0
        %v681 = vpop.f32.mrb[0].mxu0
        %v682 = vadd.f32 %v585, %v681
        %v683 = vpop.f32.mrb[0].mxu0
        %684 = vmatprep.mubr.bf16.mxu0 0
        %685 = vmatmul.mubr.bf16.gmra.mrb[0].mxu0 %v619
        %v686 = vpop.f32.mrb[0].mxu0
        %v687 = vadd.f32 %v585, %v686
        %v688 = vpop.f32.mrb[0].mxu0
        %v689 = vpop.f32.mrb[0].mxu0
        %v690 = vadd.f32 %v585, %v689
        %v691 = vpop.f32.mrb[0].mxu0
        %692 = vmatprep.mubr.bf16.mxu0 0
        %693 = vmatmul.mubr.bf16.gmra.mrb[0].mxu0 %v622
        %v694 = vpop.f32.mrb[0].mxu0
        %v695 = vadd.f32 %v585, %v694
        %v696 = vpop.f32.mrb[0].mxu0
        %v697 = vpop.f32.mrb[0].mxu0
        %v698 = vadd.f32 %v585, %v697
        %v699 = vpop.f32.mrb[0].mxu0
        %700 = vmatprep.mubr.bf16.mxu0 0
        %701 = vmatmul.mubr.bf16.gmra.mrb[0].mxu0 %v625
        %v702 = vpop.f32.mrb[0].mxu0
        %v703 = vadd.f32 %v585, %v702
        %v704 = vpop.f32.mrb[0].mxu0
        %v705 = vpop.f32.mrb[0].mxu0
        %v706 = vadd.f32 %v585, %v705
        %v707 = vpop.f32.mrb[0].mxu0
        %708 = vmatprep.mubr.bf16.mxu0 0
        %709 = vmatmul.mubr.bf16.gmra.mrb[0].mxu0 %v628
        %v710 = vpop.f32.mrb[0].mxu0
        %v711 = vadd.f32 %v585, %v710
        %v712 = vpop.f32.mrb[0].mxu0
        %v713 = vpop.f32.mrb[0].mxu0
        %v714 = vadd.f32 %v585, %v713
        %v715 = vpop.f32.mrb[0].mxu0
        %716 = vmatprep.mubr.bf16.mxu0 0
        %717 = vmatmul.mubr.bf16.gmra.mrb[0].mxu0 %v631
        %v718 = vpop.f32.mrb[0].mxu0
        %v719 = vadd.f32 %v585, %v718
        %v720 = vpop.f32.mrb[0].mxu0
        %v721 = vpop.f32.mrb[0].mxu0
        %v722 = vadd.f32 %v585, %v721
        %v723 = vpop.f32.mrb[0].mxu0
        %724 = vmatprep.mubr.bf16.mxu0 0
        %725 = vmatmul.mubr.bf16.gmra.mrb[0].mxu0 %v634
        %v726 = vpop.f32.mrb[0].mxu0
        %v727 = vadd.f32 %v585, %v726
        %v728 = vpop.f32.mrb[0].mxu0
        %v729 = vpop.f32.mrb[0].mxu0
        %v730 = vadd.f32 %v585, %v729
        %v731 = vpop.f32.mrb[0].mxu0
        %732 = vdwg.mxu0
        %v733 = vmax.f32 %v671, 0.0
        %v734 = vmax.f32 %v674, 0.0
        %v735 = vmax.f32 %v679, 0.0
        %v736 = vmax.f32 %v682, 0.0
        %v737 = vmax.f32 %v687, 0.0
        %v738 = vmax.f32 %v690, 0.0
        %v739 = vmax.f32 %v695, 0.0
        %v740 = vmax.f32 %v698, 0.0
        %v741 = vmax.f32 %v703, 0.0
        %v742 = vmax.f32 %v706, 0.0
        %v743 = vmax.f32 %v711, 0.0
        %v744 = vmax.f32 %v714, 0.0
        %v745 = vmax.f32 %v719, 0.0
        %v746 = vmax.f32 %v722, 0.0
        %v747 = vmax.f32 %v727, 0.0
        %v748 = vmax.f32 %v730, 0.0
        %v749 = vpack.c.bf16 %v734, %v733
        %v750 = vpack.c.bf16 %v736, %v735
        %v751 = vpack.c.bf16 %v738, %v737
        %v752 = vpack.c.bf16 %v740, %v739
        %v753 = vpack.c.bf16 %v742, %v741
        %v754 = vpack.c.bf16 %v744, %v743
        %v755 = vpack.c.bf16 %v746, %v745
        %v756 = vpack.c.bf16 %v748, %v747
        %v757 = vld [vmem:[#allocation3] sm:$0xff]
        %v758 = vld [vmem:[#allocation3 + $0x8] sm:$0xff]
        %v759 = vld [vmem:[#allocation3 + $0x10] sm:$0xff]
        %v760 = vld [vmem:[#allocation3 + $0x18] sm:$0xff]
        %v761 = vld [vmem:[#allocation3 + $0x20] sm:$0xff]
        %v762 = vld [vmem:[#allocation3 + $0x28] sm:$0xff]
        %v763 = vld [vmem:[#allocation3 + $0x30] sm:$0xff]
        %v764 = vld [vmem:[#allocation3 + $0x38] sm:$0xff]
        %v765 = vld [vmem:[#allocation3 + $0x40] sm:$0xff]
        %v766 = vld [vmem:[#allocation3 + $0x48] sm:$0xff]
        %v767 = vld [vmem:[#allocation3 + $0x50] sm:$0xff]
        %v768 = vld [vmem:[#allocation3 + $0x58] sm:$0xff]
        %v769 = vld [vmem:[#allocation3 + $0x60] sm:$0xff]
        %v770 = vld [vmem:[#allocation3 + $0x68] sm:$0xff]
        %v771 = vld [vmem:[#allocation3 + $0x70] sm:$0xff]
        %v772 = vld [vmem:[#allocation3 + $0x78] sm:$0xff]
        %v773 = vld [vmem:[#allocation3 + $0x80] sm:$0xff]
        %v774 = vld [vmem:[#allocation3 + $0x88] sm:$0xff]
        %v775 = vld [vmem:[#allocation3 + $0x90] sm:$0xff]
        %v776 = vld [vmem:[#allocation3 + $0x98] sm:$0xff]
        %v777 = vld [vmem:[#allocation3 + $0xa0] sm:$0xff]
        %v778 = vld [vmem:[#allocation3 + $0xa8] sm:$0xff]
        %v779 = vld [vmem:[#allocation3 + $0xb0] sm:$0xff]
        %v780 = vld [vmem:[#allocation3 + $0xb8] sm:$0xff]
        %v781 = vld [vmem:[#allocation3 + $0xc0] sm:$0xff]
        %v782 = vld [vmem:[#allocation3 + $0xc8] sm:$0xff]
        %v783 = vld [vmem:[#allocation3 + $0xd0] sm:$0xff]
        %v784 = vld [vmem:[#allocation3 + $0xd8] sm:$0xff]
        %v785 = vld [vmem:[#allocation3 + $0xe0] sm:$0xff]
        %v786 = vld [vmem:[#allocation3 + $0xe8] sm:$0xff]
        %v787 = vld [vmem:[#allocation3 + $0xf0] sm:$0xff]
        %v788 = vld [vmem:[#allocation3 + $0xf8] sm:$0xff]
        %v789 = vld [vmem:[#allocation3 + $0x100] sm:$0xff]
        %v790 = vld [vmem:[#allocation3 + $0x108] sm:$0xff]
        %v791 = vld [vmem:[#allocation3 + $0x110] sm:$0xff]
        %v792 = vld [vmem:[#allocation3 + $0x118] sm:$0xff]
        %v793 = vld [vmem:[#allocation3 + $0x120] sm:$0xff]
        %v794 = vld [vmem:[#allocation3 + $0x128] sm:$0xff]
        %v795 = vld [vmem:[#allocation3 + $0x130] sm:$0xff]
        %v796 = vld [vmem:[#allocation3 + $0x138] sm:$0xff]
        %v797 = vld [vmem:[#allocation3 + $0x140] sm:$0xff]
        %v798 = vld [vmem:[#allocation3 + $0x148] sm:$0xff]
        %v799 = vld [vmem:[#allocation3 + $0x150] sm:$0xff]
        %v800 = vld [vmem:[#allocation3 + $0x158] sm:$0xff]
        %v801 = vld [vmem:[#allocation3 + $0x160] sm:$0xff]
        %v802 = vld [vmem:[#allocation3 + $0x168] sm:$0xff]
        %v803 = vld [vmem:[#allocation3 + $0x170] sm:$0xff]
        %v804 = vld [vmem:[#allocation3 + $0x178] sm:$0xff]
        %v805 = vld [vmem:[#allocation3 + $0x180] sm:$0xff]
        %v806 = vld [vmem:[#allocation3 + $0x188] sm:$0xff]
        %v807 = vld [vmem:[#allocation3 + $0x190] sm:$0xff]
        %v808 = vld [vmem:[#allocation3 + $0x198] sm:$0xff]
        %v809 = vld [vmem:[#allocation3 + $0x1a0] sm:$0xff]
        %v810 = vld [vmem:[#allocation3 + $0x1a8] sm:$0xff]
        %v811 = vld [vmem:[#allocation3 + $0x1b0] sm:$0xff]
        %v812 = vld [vmem:[#allocation3 + $0x1b8] sm:$0xff]
        %v813 = vld [vmem:[#allocation3 + $0x1c0] sm:$0xff]
        %v814 = vld [vmem:[#allocation3 + $0x1c8] sm:$0xff]
        %v815 = vld [vmem:[#allocation3 + $0x1d0] sm:$0xff]
        %v816 = vld [vmem:[#allocation3 + $0x1d8] sm:$0xff]
        %v817 = vld [vmem:[#allocation3 + $0x1e0] sm:$0xff]
        %v818 = vld [vmem:[#allocation3 + $0x1e8] sm:$0xff]
        %v819 = vld [vmem:[#allocation3 + $0x1f0] sm:$0xff]
        %v820 = vld [vmem:[#allocation3 + $0x1f8] sm:$0xff]
        %v821 = vld [vmem:[%s6] sm:$0xff]
        %v823 = vlaneseq
        %v824 = vshrl.u32 %v823, 7
        %v825 = vsub.s32 0, %v824
        %v826 = vrot.slane %v821, %v825
        %v827 = vlaneseq
        %v828 = vshrl.u32 %v827, 7
        %v829 = vsub.s32 1, %v828
        %v830 = vrot.slane %v821, %v829
        %v831 = vlaneseq
        %v832 = vshrl.u32 %v831, 7
        %v833 = vsub.s32 2, %v832
        %v834 = vrot.slane %v821, %v833
        %v835 = vlaneseq
        %v836 = vshrl.u32 %v835, 7
        %v837 = vsub.s32 3, %v836
        %v838 = vrot.slane %v821, %v837
        %v839 = vlaneseq
        %v840 = vshrl.u32 %v839, 7
        %v841 = vsub.s32 4, %v840
        %v842 = vrot.slane %v821, %v841
        %v843 = vlaneseq
        %v844 = vshrl.u32 %v843, 7
        %v845 = vsub.s32 5, %v844
        %v846 = vrot.slane %v821, %v845
        %v847 = vlaneseq
        %v848 = vshrl.u32 %v847, 7
        %v849 = vsub.s32 6, %v848
        %v850 = vrot.slane %v821, %v849
        %v851 = vlaneseq
        %v852 = vshrl.u32 %v851, 7
        %v853 = vsub.s32 7, %v852
        %v854 = vrot.slane %v821, %v853
        %v927 = vunpack.c.l.b16 %v757
        %v928 = vunpack.c.h.b16 %v757
        %v929 = vunpack.c.l.b16 %v758
        %v930 = vunpack.c.h.b16 %v758
        %v931 = vunpack.c.l.b16 %v759
        %v932 = vunpack.c.h.b16 %v759
        %v933 = vunpack.c.l.b16 %v760
        %v934 = vunpack.c.h.b16 %v760
        %v935 = vunpack.c.l.b16 %v761
        %v936 = vunpack.c.h.b16 %v761
        %v937 = vunpack.c.l.b16 %v762
        %v938 = vunpack.c.h.b16 %v762
        %v939 = vunpack.c.l.b16 %v763
        %v940 = vunpack.c.h.b16 %v763
        %v941 = vunpack.c.l.b16 %v764
        %v942 = vunpack.c.h.b16 %v764
        %v943 = vunpack.c.l.b16 %v765
        %v944 = vunpack.c.h.b16 %v765
        %v945 = vunpack.c.l.b16 %v766
        %v946 = vunpack.c.h.b16 %v766
        %v947 = vunpack.c.l.b16 %v767
        %v948 = vunpack.c.h.b16 %v767
        %v949 = vunpack.c.l.b16 %v768
        %v950 = vunpack.c.h.b16 %v768
        %v951 = vunpack.c.l.b16 %v769
        %v952 = vunpack.c.h.b16 %v769
        %v953 = vunpack.c.l.b16 %v770
        %v954 = vunpack.c.h.b16 %v770
        %v955 = vunpack.c.l.b16 %v771
        %v956 = vunpack.c.h.b16 %v771
        %v957 = vunpack.c.l.b16 %v772
        %v958 = vunpack.c.h.b16 %v772
        %v959 = vunpack.c.l.b16 %v773
        %v960 = vunpack.c.h.b16 %v773
        %v961 = vunpack.c.l.b16 %v774
        %v962 = vunpack.c.h.b16 %v774
        %v963 = vunpack.c.l.b16 %v775
        %v964 = vunpack.c.h.b16 %v775
        %v965 = vunpack.c.l.b16 %v776
        %v966 = vunpack.c.h.b16 %v776
        %v967 = vunpack.c.l.b16 %v777
        %v968 = vunpack.c.h.b16 %v777
        %v969 = vunpack.c.l.b16 %v778
        %v970 = vunpack.c.h.b16 %v778
        %v971 = vunpack.c.l.b16 %v779
        %v972 = vunpack.c.h.b16 %v779
        %v973 = vunpack.c.l.b16 %v780
        %v974 = vunpack.c.h.b16 %v780
        %v975 = vunpack.c.l.b16 %v781
        %v976 = vunpack.c.h.b16 %v781
        %v977 = vunpack.c.l.b16 %v782
        %v978 = vunpack.c.h.b16 %v782
        %v979 = vunpack.c.l.b16 %v783
        %v980 = vunpack.c.h.b16 %v783
        %v981 = vunpack.c.l.b16 %v784
        %v982 = vunpack.c.h.b16 %v784
        %v983 = vunpack.c.l.b16 %v785
        %v984 = vunpack.c.h.b16 %v785
        %v985 = vunpack.c.l.b16 %v786
        %v986 = vunpack.c.h.b16 %v786
        %v987 = vunpack.c.l.b16 %v787
        %v988 = vunpack.c.h.b16 %v787
        %v989 = vunpack.c.l.b16 %v788
        %v990 = vunpack.c.h.b16 %v788
        %v991 = vunpack.c.l.b16 %v789
        %v992 = vunpack.c.h.b16 %v789
        %v993 = vunpack.c.l.b16 %v790
        %v994 = vunpack.c.h.b16 %v790
        %v995 = vunpack.c.l.b16 %v791
        %v996 = vunpack.c.h.b16 %v791
        %v997 = vunpack.c.l.b16 %v792
        %v998 = vunpack.c.h.b16 %v792
        %v999 = vunpack.c.l.b16 %v793
        %v1000 = vunpack.c.h.b16 %v793
        %v1001 = vunpack.c.l.b16 %v794
        %v1002 = vunpack.c.h.b16 %v794
        %v1003 = vunpack.c.l.b16 %v795
        %v1004 = vunpack.c.h.b16 %v795
        %v1005 = vunpack.c.l.b16 %v796
        %v1006 = vunpack.c.h.b16 %v796
        %v1007 = vunpack.c.l.b16 %v797
        %v1008 = vunpack.c.h.b16 %v797
        %v1009 = vunpack.c.l.b16 %v798
        %v1010 = vunpack.c.h.b16 %v798
        %v1011 = vunpack.c.l.b16 %v799
        %v1012 = vunpack.c.h.b16 %v799
        %v1013 = vunpack.c.l.b16 %v800
        %v1014 = vunpack.c.h.b16 %v800
        %v1015 = vunpack.c.l.b16 %v801
        %v1016 = vunpack.c.h.b16 %v801
        %v1017 = vunpack.c.l.b16 %v802
        %v1018 = vunpack.c.h.b16 %v802
        %v1019 = vunpack.c.l.b16 %v803
        %v1020 = vunpack.c.h.b16 %v803
        %v1021 = vunpack.c.l.b16 %v804
        %v1022 = vunpack.c.h.b16 %v804
        %v1023 = vunpack.c.l.b16 %v805
        %v1024 = vunpack.c.h.b16 %v805
        %v1025 = vunpack.c.l.b16 %v806
        %v1026 = vunpack.c.h.b16 %v806
        %v1027 = vunpack.c.l.b16 %v807
        %v1028 = vunpack.c.h.b16 %v807
        %v1029 = vunpack.c.l.b16 %v808
        %v1030 = vunpack.c.h.b16 %v808
        %v1031 = vunpack.c.l.b16 %v809
        %v1032 = vunpack.c.h.b16 %v809
        %v1033 = vunpack.c.l.b16 %v810
        %v1034 = vunpack.c.h.b16 %v810
        %v1035 = vunpack.c.l.b16 %v811
        %v1036 = vunpack.c.h.b16 %v811
        %v1037 = vunpack.c.l.b16 %v812
        %v1038 = vunpack.c.h.b16 %v812
        %v1039 = vunpack.c.l.b16 %v813
        %v1040 = vunpack.c.h.b16 %v813
        %v1041 = vunpack.c.l.b16 %v814
        %v1042 = vunpack.c.h.b16 %v814
        %v1043 = vunpack.c.l.b16 %v815
        %v1044 = vunpack.c.h.b16 %v815
        %v1045 = vunpack.c.l.b16 %v816
        %v1046 = vunpack.c.h.b16 %v816
        %v1047 = vunpack.c.l.b16 %v817
        %v1048 = vunpack.c.h.b16 %v817
        %v1049 = vunpack.c.l.b16 %v818
        %v1050 = vunpack.c.h.b16 %v818
        %v1051 = vunpack.c.l.b16 %v819
        %v1052 = vunpack.c.h.b16 %v819
        %v1053 = vunpack.c.l.b16 %v820
        %v1054 = vunpack.c.h.b16 %v820
        %v1055 = vpack.c.b16 %v935, %v927
        %v1056 = vpack.c.b16 %v936, %v928
        %v1057 = vpack.c.b16 %v937, %v929
        %v1058 = vpack.c.b16 %v938, %v930
        %v1059 = vpack.c.b16 %v939, %v931
        %v1060 = vpack.c.b16 %v940, %v932
        %v1061 = vpack.c.b16 %v941, %v933
        %v1062 = vpack.c.b16 %v942, %v934
        %v1063 = vpack.c.b16 %v951, %v943
        %v1064 = vpack.c.b16 %v952, %v944
        %v1065 = vpack.c.b16 %v953, %v945
        %v1066 = vpack.c.b16 %v954, %v946
        %v1067 = vpack.c.b16 %v955, %v947
        %v1068 = vpack.c.b16 %v956, %v948
        %v1069 = vpack.c.b16 %v957, %v949
        %v1070 = vpack.c.b16 %v958, %v950
        %v1071 = vpack.c.b16 %v967, %v959
        %v1072 = vpack.c.b16 %v968, %v960
        %v1073 = vpack.c.b16 %v969, %v961
        %v1074 = vpack.c.b16 %v970, %v962
        %v1075 = vpack.c.b16 %v971, %v963
        %v1076 = vpack.c.b16 %v972, %v964
        %v1077 = vpack.c.b16 %v973, %v965
        %v1078 = vpack.c.b16 %v974, %v966
        %v1079 = vpack.c.b16 %v983, %v975
        %v1080 = vpack.c.b16 %v984, %v976
        %v1081 = vpack.c.b16 %v985, %v977
        %v1082 = vpack.c.b16 %v986, %v978
        %v1083 = vpack.c.b16 %v987, %v979
        %v1084 = vpack.c.b16 %v988, %v980
        %v1085 = vpack.c.b16 %v989, %v981
        %v1086 = vpack.c.b16 %v990, %v982
        %v1087 = vpack.c.b16 %v999, %v991
        %v1088 = vpack.c.b16 %v1000, %v992
        %v1089 = vpack.c.b16 %v1001, %v993
        %v1090 = vpack.c.b16 %v1002, %v994
        %v1091 = vpack.c.b16 %v1003, %v995
        %v1092 = vpack.c.b16 %v1004, %v996
        %v1093 = vpack.c.b16 %v1005, %v997
        %v1094 = vpack.c.b16 %v1006, %v998
        %v1095 = vpack.c.b16 %v1015, %v1007
        %v1096 = vpack.c.b16 %v1016, %v1008
        %v1097 = vpack.c.b16 %v1017, %v1009
        %v1098 = vpack.c.b16 %v1018, %v1010
        %v1099 = vpack.c.b16 %v1019, %v1011
        %v1100 = vpack.c.b16 %v1020, %v1012
        %v1101 = vpack.c.b16 %v1021, %v1013
        %v1102 = vpack.c.b16 %v1022, %v1014
        %v1103 = vpack.c.b16 %v1031, %v1023
        %v1104 = vpack.c.b16 %v1032, %v1024
        %v1105 = vpack.c.b16 %v1033, %v1025
        %v1106 = vpack.c.b16 %v1034, %v1026
        %v1107 = vpack.c.b16 %v1035, %v1027
        %v1108 = vpack.c.b16 %v1036, %v1028
        %v1109 = vpack.c.b16 %v1037, %v1029
        %v1110 = vpack.c.b16 %v1038, %v1030
        %v1111 = vpack.c.b16 %v1047, %v1039
        %v1112 = vpack.c.b16 %v1048, %v1040
        %v1113 = vpack.c.b16 %v1049, %v1041
        %v1114 = vpack.c.b16 %v1050, %v1042
        %v1115 = vpack.c.b16 %v1051, %v1043
        %v1116 = vpack.c.b16 %v1052, %v1044
        %v1117 = vpack.c.b16 %v1053, %v1045
        %v1118 = vpack.c.b16 %v1054, %v1046
        %1183 = vmatprep.subr.bf16.mxu0 %v1056
        %1184 = vmatpush1.bf16.msra.mxu0 %v1055
        %1185 = vmatprep.subr.bf16.mxu0 %v1064
        %1186 = vmatpush1.bf16.msra.mxu0 %v1063
        %1187 = vmatprep.subr.bf16.mxu0 %v1072
        %1188 = vmatpush1.bf16.msra.mxu0 %v1071
        %1189 = vmatprep.subr.bf16.mxu0 %v1080
        %1190 = vmatpush1.bf16.msra.mxu0 %v1079
        %1191 = vmatprep.subr.bf16.mxu0 %v1088
        %1192 = vmatpush1.bf16.msra.mxu0 %v1087
        %1193 = vmatprep.subr.bf16.mxu0 %v1096
        %1194 = vmatpush1.bf16.msra.mxu0 %v1095
        %1195 = vmatprep.subr.bf16.mxu0 %v1104
        %1196 = vmatpush1.bf16.msra.mxu0 %v1103
        %1197 = vmatprep.subr.bf16.mxu0 %v1112
        %1198 = vmatpush1.bf16.msra.mxu0 %v1111
        %1199 = vmatprep.subr.bf16.mxu0 0
        %1200 = vmatpush1.bf16.msra.mxu0 0
        %1201 = vmatprep.subr.bf16.mxu0 0
        %1202 = vmatpush1.bf16.msra.mxu0 0
        %1203 = vmatprep.subr.bf16.mxu0 0
        %1204 = vmatpush1.bf16.msra.mxu0 0
        %1205 = vmatprep.subr.bf16.mxu0 0
        %1206 = vmatpush1.bf16.msra.mxu0 0
        %1207 = vmatprep.subr.bf16.mxu0 0
        %1208 = vmatpush1.bf16.msra.mxu0 0
        %1209 = vmatprep.subr.bf16.mxu0 0
        %1210 = vmatpush1.bf16.msra.mxu0 0
        %1211 = vmatprep.subr.bf16.mxu0 0
        %1212 = vmatpush1.bf16.msra.mxu0 0
        %1213 = vmatprep.subr.bf16.mxu0 0
        %1214 = vmatpush1.bf16.msra.mxu0 0
        %1215 = vmatprep.mubr.bf16.mxu0 0
        %1216 = vmatmul.mubr.bf16.gmra.mrb[0].mxu0 %v749
        %v1217 = vpop.f32.mrb[0].mxu0
        %v1218 = vadd.f32 %v826, %v1217
        %v1219 = vpop.f32.mrb[0].mxu0
        %v1220 = vadd.f32 %v830, %v1219
        %v1221 = vpop.f32.mrb[0].mxu0
        %v1222 = vadd.f32 %v826, %v1221
        %v1223 = vpop.f32.mrb[0].mxu0
        %v1224 = vadd.f32 %v830, %v1223
        %1225 = vmatprep.mubr.bf16.mxu0 0
        %1226 = vmatmul.mubr.bf16.gmra.mrb[0].mxu0 %v750
        %v1227 = vpop.f32.mrb[0].mxu0
        %v1228 = vadd.f32 %v826, %v1227
        %v1229 = vpop.f32.mrb[0].mxu0
        %v1230 = vadd.f32 %v830, %v1229
        %v1231 = vpop.f32.mrb[0].mxu0
        %v1232 = vadd.f32 %v826, %v1231
        %v1233 = vpop.f32.mrb[0].mxu0
        %v1234 = vadd.f32 %v830, %v1233
        %1235 = vmatprep.mubr.bf16.mxu0 0
        %1236 = vmatmul.mubr.bf16.gmra.mrb[0].mxu0 %v751
        %v1237 = vpop.f32.mrb[0].mxu0
        %v1238 = vadd.f32 %v826, %v1237
        %v1239 = vpop.f32.mrb[0].mxu0
        %v1240 = vadd.f32 %v830, %v1239
        %v1241 = vpop.f32.mrb[0].mxu0
        %v1242 = vadd.f32 %v826, %v1241
        %v1243 = vpop.f32.mrb[0].mxu0
        %v1244 = vadd.f32 %v830, %v1243
        %1245 = vmatprep.mubr.bf16.mxu0 0
        %1246 = vmatmul.mubr.bf16.gmra.mrb[0].mxu0 %v752
        %v1247 = vpop.f32.mrb[0].mxu0
        %v1248 = vadd.f32 %v826, %v1247
        %v1249 = vpop.f32.mrb[0].mxu0
        %v1250 = vadd.f32 %v830, %v1249
        %v1251 = vpop.f32.mrb[0].mxu0
        %v1252 = vadd.f32 %v826, %v1251
        %v1253 = vpop.f32.mrb[0].mxu0
        %v1254 = vadd.f32 %v830, %v1253
        %1255 = vmatprep.mubr.bf16.mxu0 0
        %1256 = vmatmul.mubr.bf16.gmra.mrb[0].mxu0 %v753
        %v1257 = vpop.f32.mrb[0].mxu0
        %v1258 = vadd.f32 %v826, %v1257
        %v1259 = vpop.f32.mrb[0].mxu0
        %v1260 = vadd.f32 %v830, %v1259
        %v1261 = vpop.f32.mrb[0].mxu0
        %v1262 = vadd.f32 %v826, %v1261
        %v1263 = vpop.f32.mrb[0].mxu0
        %v1264 = vadd.f32 %v830, %v1263
        %1265 = vmatprep.mubr.bf16.mxu0 0
        %1266 = vmatmul.mubr.bf16.gmra.mrb[0].mxu0 %v754
        %v1267 = vpop.f32.mrb[0].mxu0
        %v1268 = vadd.f32 %v826, %v1267
        %v1269 = vpop.f32.mrb[0].mxu0
        %v1270 = vadd.f32 %v830, %v1269
        %v1271 = vpop.f32.mrb[0].mxu0
        %v1272 = vadd.f32 %v826, %v1271
        %v1273 = vpop.f32.mrb[0].mxu0
        %v1274 = vadd.f32 %v830, %v1273
        %1275 = vmatprep.mubr.bf16.mxu0 0
        %1276 = vmatmul.mubr.bf16.gmra.mrb[0].mxu0 %v755
        %v1277 = vpop.f32.mrb[0].mxu0
        %v1278 = vadd.f32 %v826, %v1277
        %v1279 = vpop.f32.mrb[0].mxu0
        %v1280 = vadd.f32 %v830, %v1279
        %v1281 = vpop.f32.mrb[0].mxu0
        %v1282 = vadd.f32 %v826, %v1281
        %v1283 = vpop.f32.mrb[0].mxu0
        %v1284 = vadd.f32 %v830, %v1283
        %1285 = vmatprep.mubr.bf16.mxu0 0
        %1286 = vmatmul.mubr.bf16.gmra.mrb[0].mxu0 %v756
        %v1287 = vpop.f32.mrb[0].mxu0
        %v1288 = vadd.f32 %v826, %v1287
        %v1289 = vpop.f32.mrb[0].mxu0
        %v1290 = vadd.f32 %v830, %v1289
        %v1291 = vpop.f32.mrb[0].mxu0
        %v1292 = vadd.f32 %v826, %v1291
        %v1293 = vpop.f32.mrb[0].mxu0
        %v1294 = vadd.f32 %v830, %v1293
        %1295 = vdwg.mxu0
        %1296 = vmatprep.subr.bf16.mxu0 %v1058
        %1297 = vmatpush1.bf16.msra.mxu0 %v1057
        %1298 = vmatprep.subr.bf16.mxu0 %v1066
        %1299 = vmatpush1.bf16.msra.mxu0 %v1065
        %1300 = vmatprep.subr.bf16.mxu0 %v1074
        %1301 = vmatpush1.bf16.msra.mxu0 %v1073
        %1302 = vmatprep.subr.bf16.mxu0 %v1082
        %1303 = vmatpush1.bf16.msra.mxu0 %v1081
        %1304 = vmatprep.subr.bf16.mxu0 %v1090
        %1305 = vmatpush1.bf16.msra.mxu0 %v1089
        %1306 = vmatprep.subr.bf16.mxu0 %v1098
        %1307 = vmatpush1.bf16.msra.mxu0 %v1097
        %1308 = vmatprep.subr.bf16.mxu0 %v1106
        %1309 = vmatpush1.bf16.msra.mxu0 %v1105
        %1310 = vmatprep.subr.bf16.mxu0 %v1114
        %1311 = vmatpush1.bf16.msra.mxu0 %v1113
        %1312 = vmatprep.subr.bf16.mxu0 0
        %1313 = vmatpush1.bf16.msra.mxu0 0
        %1314 = vmatprep.subr.bf16.mxu0 0
        %1315 = vmatpush1.bf16.msra.mxu0 0
        %1316 = vmatprep.subr.bf16.mxu0 0
        %1317 = vmatpush1.bf16.msra.mxu0 0
        %1318 = vmatprep.subr.bf16.mxu0 0
        %1319 = vmatpush1.bf16.msra.mxu0 0
        %1320 = vmatprep.subr.bf16.mxu0 0
        %1321 = vmatpush1.bf16.msra.mxu0 0
        %1322 = vmatprep.subr.bf16.mxu0 0
        %1323 = vmatpush1.bf16.msra.mxu0 0
        %1324 = vmatprep.subr.bf16.mxu0 0
        %1325 = vmatpush1.bf16.msra.mxu0 0
        %1326 = vmatprep.subr.bf16.mxu0 0
        %1327 = vmatpush1.bf16.msra.mxu0 0
        %1328 = vmatprep.mubr.bf16.mxu0 0
        %1329 = vmatmul.mubr.bf16.gmra.mrb[0].mxu0 %v749
        %v1330 = vpop.f32.mrb[0].mxu0
        %v1331 = vadd.f32 %v834, %v1330
        %v1332 = vpop.f32.mrb[0].mxu0
        %v1333 = vadd.f32 %v838, %v1332
        %v1334 = vpop.f32.mrb[0].mxu0
        %v1335 = vadd.f32 %v834, %v1334
        %v1336 = vpop.f32.mrb[0].mxu0
        %v1337 = vadd.f32 %v838, %v1336
        %1338 = vmatprep.mubr.bf16.mxu0 0
        %1339 = vmatmul.mubr.bf16.gmra.mrb[0].mxu0 %v750
        %v1340 = vpop.f32.mrb[0].mxu0
        %v1341 = vadd.f32 %v834, %v1340
        %v1342 = vpop.f32.mrb[0].mxu0
        %v1343 = vadd.f32 %v838, %v1342
        %v1344 = vpop.f32.mrb[0].mxu0
        %v1345 = vadd.f32 %v834, %v1344
        %v1346 = vpop.f32.mrb[0].mxu0
        %v1347 = vadd.f32 %v838, %v1346
        %1348 = vmatprep.mubr.bf16.mxu0 0
        %1349 = vmatmul.mubr.bf16.gmra.mrb[0].mxu0 %v751
        %v1350 = vpop.f32.mrb[0].mxu0
        %v1351 = vadd.f32 %v834, %v1350
        %v1352 = vpop.f32.mrb[0].mxu0
        %v1353 = vadd.f32 %v838, %v1352
        %v1354 = vpop.f32.mrb[0].mxu0
        %v1355 = vadd.f32 %v834, %v1354
        %v1356 = vpop.f32.mrb[0].mxu0
        %v1357 = vadd.f32 %v838, %v1356
        %1358 = vmatprep.mubr.bf16.mxu0 0
        %1359 = vmatmul.mubr.bf16.gmra.mrb[0].mxu0 %v752
        %v1360 = vpop.f32.mrb[0].mxu0
        %v1361 = vadd.f32 %v834, %v1360
        %v1362 = vpop.f32.mrb[0].mxu0
        %v1363 = vadd.f32 %v838, %v1362
        %v1364 = vpop.f32.mrb[0].mxu0
        %v1365 = vadd.f32 %v834, %v1364
        %v1366 = vpop.f32.mrb[0].mxu0
        %v1367 = vadd.f32 %v838, %v1366
        %1368 = vmatprep.mubr.bf16.mxu0 0
        %1369 = vmatmul.mubr.bf16.gmra.mrb[0].mxu0 %v753
        %v1370 = vpop.f32.mrb[0].mxu0
        %v1371 = vadd.f32 %v834, %v1370
        %v1372 = vpop.f32.mrb[0].mxu0
        %v1373 = vadd.f32 %v838, %v1372
        %v1374 = vpop.f32.mrb[0].mxu0
        %v1375 = vadd.f32 %v834, %v1374
        %v1376 = vpop.f32.mrb[0].mxu0
        %v1377 = vadd.f32 %v838, %v1376
        %1378 = vmatprep.mubr.bf16.mxu0 0
        %1379 = vmatmul.mubr.bf16.gmra.mrb[0].mxu0 %v754
        %v1380 = vpop.f32.mrb[0].mxu0
        %v1381 = vadd.f32 %v834, %v1380
        %v1382 = vpop.f32.mrb[0].mxu0
        %v1383 = vadd.f32 %v838, %v1382
        %v1384 = vpop.f32.mrb[0].mxu0
        %v1385 = vadd.f32 %v834, %v1384
        %v1386 = vpop.f32.mrb[0].mxu0
        %v1387 = vadd.f32 %v838, %v1386
        %1388 = vmatprep.mubr.bf16.mxu0 0
        %1389 = vmatmul.mubr.bf16.gmra.mrb[0].mxu0 %v755
        %v1390 = vpop.f32.mrb[0].mxu0
        %v1391 = vadd.f32 %v834, %v1390
        %v1392 = vpop.f32.mrb[0].mxu0
        %v1393 = vadd.f32 %v838, %v1392
        %v1394 = vpop.f32.mrb[0].mxu0
        %v1395 = vadd.f32 %v834, %v1394
        %v1396 = vpop.f32.mrb[0].mxu0
        %v1397 = vadd.f32 %v838, %v1396
        %1398 = vmatprep.mubr.bf16.mxu0 0
        %1399 = vmatmul.mubr.bf16.gmra.mrb[0].mxu0 %v756
        %v1400 = vpop.f32.mrb[0].mxu0
        %v1401 = vadd.f32 %v834, %v1400
        %v1402 = vpop.f32.mrb[0].mxu0
        %v1403 = vadd.f32 %v838, %v1402
        %v1404 = vpop.f32.mrb[0].mxu0
        %v1405 = vadd.f32 %v834, %v1404
        %v1406 = vpop.f32.mrb[0].mxu0
        %v1407 = vadd.f32 %v838, %v1406
        %1408 = vdwg.mxu0
        %1409 = vmatprep.subr.bf16.mxu0 %v1060
        %1410 = vmatpush1.bf16.msra.mxu0 %v1059
        %1411 = vmatprep.subr.bf16.mxu0 %v1068
        %1412 = vmatpush1.bf16.msra.mxu0 %v1067
        %1413 = vmatprep.subr.bf16.mxu0 %v1076
        %1414 = vmatpush1.bf16.msra.mxu0 %v1075
        %1415 = vmatprep.subr.bf16.mxu0 %v1084
        %1416 = vmatpush1.bf16.msra.mxu0 %v1083
        %1417 = vmatprep.subr.bf16.mxu0 %v1092
        %1418 = vmatpush1.bf16.msra.mxu0 %v1091
        %1419 = vmatprep.subr.bf16.mxu0 %v1100
        %1420 = vmatpush1.bf16.msra.mxu0 %v1099
        %1421 = vmatprep.subr.bf16.mxu0 %v1108
        %1422 = vmatpush1.bf16.msra.mxu0 %v1107
        %1423 = vmatprep.subr.bf16.mxu0 %v1116
        %1424 = vmatpush1.bf16.msra.mxu0 %v1115
        %1425 = vmatprep.subr.bf16.mxu0 0
        %1426 = vmatpush1.bf16.msra.mxu0 0
        %1427 = vmatprep.subr.bf16.mxu0 0
        %1428 = vmatpush1.bf16.msra.mxu0 0
        %1429 = vmatprep.subr.bf16.mxu0 0
        %1430 = vmatpush1.bf16.msra.mxu0 0
        %1431 = vmatprep.subr.bf16.mxu0 0
        %1432 = vmatpush1.bf16.msra.mxu0 0
        %1433 = vmatprep.subr.bf16.mxu0 0
        %1434 = vmatpush1.bf16.msra.mxu0 0
        %1435 = vmatprep.subr.bf16.mxu0 0
        %1436 = vmatpush1.bf16.msra.mxu0 0
        %1437 = vmatprep.subr.bf16.mxu0 0
        %1438 = vmatpush1.bf16.msra.mxu0 0
        %1439 = vmatprep.subr.bf16.mxu0 0
        %1440 = vmatpush1.bf16.msra.mxu0 0
        %1441 = vmatprep.mubr.bf16.mxu0 0
        %1442 = vmatmul.mubr.bf16.gmra.mrb[0].mxu0 %v749
        %v1443 = vpop.f32.mrb[0].mxu0
        %v1444 = vadd.f32 %v842, %v1443
        %v1445 = vpop.f32.mrb[0].mxu0
        %v1446 = vadd.f32 %v846, %v1445
        %v1447 = vpop.f32.mrb[0].mxu0
        %v1448 = vadd.f32 %v842, %v1447
        %v1449 = vpop.f32.mrb[0].mxu0
        %v1450 = vadd.f32 %v846, %v1449
        %1451 = vmatprep.mubr.bf16.mxu0 0
        %1452 = vmatmul.mubr.bf16.gmra.mrb[0].mxu0 %v750
        %v1453 = vpop.f32.mrb[0].mxu0
        %v1454 = vadd.f32 %v842, %v1453
        %v1455 = vpop.f32.mrb[0].mxu0
        %v1456 = vadd.f32 %v846, %v1455
        %v1457 = vpop.f32.mrb[0].mxu0
        %v1458 = vadd.f32 %v842, %v1457
        %v1459 = vpop.f32.mrb[0].mxu0
        %v1460 = vadd.f32 %v846, %v1459
        %1461 = vmatprep.mubr.bf16.mxu0 0
        %1462 = vmatmul.mubr.bf16.gmra.mrb[0].mxu0 %v751
        %v1463 = vpop.f32.mrb[0].mxu0
        %v1464 = vadd.f32 %v842, %v1463
        %v1465 = vpop.f32.mrb[0].mxu0
        %v1466 = vadd.f32 %v846, %v1465
        %v1467 = vpop.f32.mrb[0].mxu0
        %v1468 = vadd.f32 %v842, %v1467
        %v1469 = vpop.f32.mrb[0].mxu0
        %v1470 = vadd.f32 %v846, %v1469
        %1471 = vmatprep.mubr.bf16.mxu0 0
        %1472 = vmatmul.mubr.bf16.gmra.mrb[0].mxu0 %v752
        %v1473 = vpop.f32.mrb[0].mxu0
        %v1474 = vadd.f32 %v842, %v1473
        %v1475 = vpop.f32.mrb[0].mxu0
        %v1476 = vadd.f32 %v846, %v1475
        %v1477 = vpop.f32.mrb[0].mxu0
        %v1478 = vadd.f32 %v842, %v1477
        %v1479 = vpop.f32.mrb[0].mxu0
        %v1480 = vadd.f32 %v846, %v1479
        %1481 = vmatprep.mubr.bf16.mxu0 0
        %1482 = vmatmul.mubr.bf16.gmra.mrb[0].mxu0 %v753
        %v1483 = vpop.f32.mrb[0].mxu0
        %v1484 = vadd.f32 %v842, %v1483
        %v1485 = vpop.f32.mrb[0].mxu0
        %v1486 = vadd.f32 %v846, %v1485
        %v1487 = vpop.f32.mrb[0].mxu0
        %v1488 = vadd.f32 %v842, %v1487
        %v1489 = vpop.f32.mrb[0].mxu0
        %v1490 = vadd.f32 %v846, %v1489
        %1491 = vmatprep.mubr.bf16.mxu0 0
        %1492 = vmatmul.mubr.bf16.gmra.mrb[0].mxu0 %v754
        %v1493 = vpop.f32.mrb[0].mxu0
        %v1494 = vadd.f32 %v842, %v1493
        %v1495 = vpop.f32.mrb[0].mxu0
        %v1496 = vadd.f32 %v846, %v1495
        %v1497 = vpop.f32.mrb[0].mxu0
        %v1498 = vadd.f32 %v842, %v1497
        %v1499 = vpop.f32.mrb[0].mxu0
        %v1500 = vadd.f32 %v846, %v1499
        %1501 = vmatprep.mubr.bf16.mxu0 0
        %1502 = vmatmul.mubr.bf16.gmra.mrb[0].mxu0 %v755
        %v1503 = vpop.f32.mrb[0].mxu0
        %v1504 = vadd.f32 %v842, %v1503
        %v1505 = vpop.f32.mrb[0].mxu0
        %v1506 = vadd.f32 %v846, %v1505
        %v1507 = vpop.f32.mrb[0].mxu0
        %v1508 = vadd.f32 %v842, %v1507
        %v1509 = vpop.f32.mrb[0].mxu0
        %v1510 = vadd.f32 %v846, %v1509
        %1511 = vmatprep.mubr.bf16.mxu0 0
        %1512 = vmatmul.mubr.bf16.gmra.mrb[0].mxu0 %v756
        %v1513 = vpop.f32.mrb[0].mxu0
        %v1514 = vadd.f32 %v842, %v1513
        %v1515 = vpop.f32.mrb[0].mxu0
        %v1516 = vadd.f32 %v846, %v1515
        %v1517 = vpop.f32.mrb[0].mxu0
        %v1518 = vadd.f32 %v842, %v1517
        %v1519 = vpop.f32.mrb[0].mxu0
        %v1520 = vadd.f32 %v846, %v1519
        %1521 = vdwg.mxu0
        %1522 = vmatprep.subr.bf16.mxu0 %v1062
        %1523 = vmatpush1.bf16.msra.mxu0 %v1061
        %1524 = vmatprep.subr.bf16.mxu0 %v1070
        %1525 = vmatpush1.bf16.msra.mxu0 %v1069
        %1526 = vmatprep.subr.bf16.mxu0 %v1078
        %1527 = vmatpush1.bf16.msra.mxu0 %v1077
        %1528 = vmatprep.subr.bf16.mxu0 %v1086
        %1529 = vmatpush1.bf16.msra.mxu0 %v1085
        %1530 = vmatprep.subr.bf16.mxu0 %v1094
        %1531 = vmatpush1.bf16.msra.mxu0 %v1093
        %1532 = vmatprep.subr.bf16.mxu0 %v1102
        %1533 = vmatpush1.bf16.msra.mxu0 %v1101
        %1534 = vmatprep.subr.bf16.mxu0 %v1110
        %1535 = vmatpush1.bf16.msra.mxu0 %v1109
        %1536 = vmatprep.subr.bf16.mxu0 %v1118
        %1537 = vmatpush1.bf16.msra.mxu0 %v1117
        %1538 = vmatprep.subr.bf16.mxu0 0
        %1539 = vmatpush1.bf16.msra.mxu0 0
        %1540 = vmatprep.subr.bf16.mxu0 0
        %1541 = vmatpush1.bf16.msra.mxu0 0
        %1542 = vmatprep.subr.bf16.mxu0 0
        %1543 = vmatpush1.bf16.msra.mxu0 0
        %1544 = vmatprep.subr.bf16.mxu0 0
        %1545 = vmatpush1.bf16.msra.mxu0 0
        %1546 = vmatprep.subr.bf16.mxu0 0
        %1547 = vmatpush1.bf16.msra.mxu0 0
        %1548 = vmatprep.subr.bf16.mxu0 0
        %1549 = vmatpush1.bf16.msra.mxu0 0
        %1550 = vmatprep.subr.bf16.mxu0 0
        %1551 = vmatpush1.bf16.msra.mxu0 0
        %1552 = vmatprep.subr.bf16.mxu0 0
        %1553 = vmatpush1.bf16.msra.mxu0 0
        %1554 = vmatprep.mubr.bf16.mxu0 0
        %1555 = vmatmul.mubr.bf16.gmra.mrb[0].mxu0 %v749
        %v1556 = vpop.f32.mrb[0].mxu0
        %v1557 = vadd.f32 %v850, %v1556
        %v1558 = vpop.f32.mrb[0].mxu0
        %v1559 = vadd.f32 %v854, %v1558
        %v1560 = vpop.f32.mrb[0].mxu0
        %v1561 = vadd.f32 %v850, %v1560
        %v1562 = vpop.f32.mrb[0].mxu0
        %v1563 = vadd.f32 %v854, %v1562
        %1564 = vmatprep.mubr.bf16.mxu0 0
        %1565 = vmatmul.mubr.bf16.gmra.mrb[0].mxu0 %v750
        %v1566 = vpop.f32.mrb[0].mxu0
        %v1567 = vadd.f32 %v850, %v1566
        %v1568 = vpop.f32.mrb[0].mxu0
        %v1569 = vadd.f32 %v854, %v1568
        %v1570 = vpop.f32.mrb[0].mxu0
        %v1571 = vadd.f32 %v850, %v1570
        %v1572 = vpop.f32.mrb[0].mxu0
        %v1573 = vadd.f32 %v854, %v1572
        %1574 = vmatprep.mubr.bf16.mxu0 0
        %1575 = vmatmul.mubr.bf16.gmra.mrb[0].mxu0 %v751
        %v1576 = vpop.f32.mrb[0].mxu0
        %v1577 = vadd.f32 %v850, %v1576
        %v1578 = vpop.f32.mrb[0].mxu0
        %v1579 = vadd.f32 %v854, %v1578
        %v1580 = vpop.f32.mrb[0].mxu0
        %v1581 = vadd.f32 %v850, %v1580
        %v1582 = vpop.f32.mrb[0].mxu0
        %v1583 = vadd.f32 %v854, %v1582
        %1584 = vmatprep.mubr.bf16.mxu0 0
        %1585 = vmatmul.mubr.bf16.gmra.mrb[0].mxu0 %v752
        %v1586 = vpop.f32.mrb[0].mxu0
        %v1587 = vadd.f32 %v850, %v1586
        %v1588 = vpop.f32.mrb[0].mxu0
        %v1589 = vadd.f32 %v854, %v1588
        %v1590 = vpop.f32.mrb[0].mxu0
        %v1591 = vadd.f32 %v850, %v1590
        %v1592 = vpop.f32.mrb[0].mxu0
        %v1593 = vadd.f32 %v854, %v1592
        %1594 = vmatprep.mubr.bf16.mxu0 0
        %1595 = vmatmul.mubr.bf16.gmra.mrb[0].mxu0 %v753
        %v1596 = vpop.f32.mrb[0].mxu0
        %v1597 = vadd.f32 %v850, %v1596
        %v1598 = vpop.f32.mrb[0].mxu0
        %v1599 = vadd.f32 %v854, %v1598
        %v1600 = vpop.f32.mrb[0].mxu0
        %v1601 = vadd.f32 %v850, %v1600
        %v1602 = vpop.f32.mrb[0].mxu0
        %v1603 = vadd.f32 %v854, %v1602
        %1604 = vmatprep.mubr.bf16.mxu0 0
        %1605 = vmatmul.mubr.bf16.gmra.mrb[0].mxu0 %v754
        %v1606 = vpop.f32.mrb[0].mxu0
        %v1607 = vadd.f32 %v850, %v1606
        %v1608 = vpop.f32.mrb[0].mxu0
        %v1609 = vadd.f32 %v854, %v1608
        %v1610 = vpop.f32.mrb[0].mxu0
        %v1611 = vadd.f32 %v850, %v1610
        %v1612 = vpop.f32.mrb[0].mxu0
        %v1613 = vadd.f32 %v854, %v1612
        %1614 = vmatprep.mubr.bf16.mxu0 0
        %1615 = vmatmul.mubr.bf16.gmra.mrb[0].mxu0 %v755
        %v1616 = vpop.f32.mrb[0].mxu0
        %v1617 = vadd.f32 %v850, %v1616
        %v1618 = vpop.f32.mrb[0].mxu0
        %v1619 = vadd.f32 %v854, %v1618
        %v1620 = vpop.f32.mrb[0].mxu0
        %v1621 = vadd.f32 %v850, %v1620
        %v1622 = vpop.f32.mrb[0].mxu0
        %v1623 = vadd.f32 %v854, %v1622
        %1624 = vmatprep.mubr.bf16.mxu0 0
        %1625 = vmatmul.mubr.bf16.gmra.mrb[0].mxu0 %v756
        %v1626 = vpop.f32.mrb[0].mxu0
        %v1627 = vadd.f32 %v850, %v1626
        %v1628 = vpop.f32.mrb[0].mxu0
        %v1629 = vadd.f32 %v854, %v1628
        %v1630 = vpop.f32.mrb[0].mxu0
        %v1631 = vadd.f32 %v850, %v1630
        %v1632 = vpop.f32.mrb[0].mxu0
        %v1633 = vadd.f32 %v854, %v1632
        %1634 = vdwg.mxu0
        %v1635 = vmax.f32 %v1218, 0.0
        %v1636 = vmax.f32 %v1220, 0.0
        %v1637 = vmax.f32 %v1331, 0.0
        %v1638 = vmax.f32 %v1333, 0.0
        %v1639 = vmax.f32 %v1444, 0.0
        %v1640 = vmax.f32 %v1446, 0.0
        %v1641 = vmax.f32 %v1557, 0.0
        %v1642 = vmax.f32 %v1559, 0.0
        %v1643 = vmax.f32 %v1222, 0.0
        %v1644 = vmax.f32 %v1224, 0.0
        %v1645 = vmax.f32 %v1335, 0.0
        %v1646 = vmax.f32 %v1337, 0.0
        %v1647 = vmax.f32 %v1448, 0.0
        %v1648 = vmax.f32 %v1450, 0.0
        %v1649 = vmax.f32 %v1561, 0.0
        %v1650 = vmax.f32 %v1563, 0.0
        %v1651 = vmax.f32 %v1228, 0.0
        %v1652 = vmax.f32 %v1230, 0.0
        %v1653 = vmax.f32 %v1341, 0.0
        %v1654 = vmax.f32 %v1343, 0.0
        %v1655 = vmax.f32 %v1454, 0.0
        %v1656 = vmax.f32 %v1456, 0.0
        %v1657 = vmax.f32 %v1567, 0.0
        %v1658 = vmax.f32 %v1569, 0.0
        %v1659 = vmax.f32 %v1232, 0.0
        %v1660 = vmax.f32 %v1234, 0.0
        %v1661 = vmax.f32 %v1345, 0.0
        %v1662 = vmax.f32 %v1347, 0.0
        %v1663 = vmax.f32 %v1458, 0.0
        %v1664 = vmax.f32 %v1460, 0.0
        %v1665 = vmax.f32 %v1571, 0.0
        %v1666 = vmax.f32 %v1573, 0.0
        %v1667 = vmax.f32 %v1238, 0.0
        %v1668 = vmax.f32 %v1240, 0.0
        %v1669 = vmax.f32 %v1351, 0.0
        %v1670 = vmax.f32 %v1353, 0.0
        %v1671 = vmax.f32 %v1464, 0.0
        %v1672 = vmax.f32 %v1466, 0.0
        %v1673 = vmax.f32 %v1577, 0.0
        %v1674 = vmax.f32 %v1579, 0.0
        %v1675 = vmax.f32 %v1242, 0.0
        %v1676 = vmax.f32 %v1244, 0.0
        %v1677 = vmax.f32 %v1355, 0.0
        %v1678 = vmax.f32 %v1357, 0.0
        %v1679 = vmax.f32 %v1468, 0.0
        %v1680 = vmax.f32 %v1470, 0.0
        %v1681 = vmax.f32 %v1581, 0.0
        %v1682 = vmax.f32 %v1583, 0.0
        %v1683 = vmax.f32 %v1248, 0.0
        %v1684 = vmax.f32 %v1250, 0.0
        %v1685 = vmax.f32 %v1361, 0.0
        %v1686 = vmax.f32 %v1363, 0.0
        %v1687 = vmax.f32 %v1474, 0.0
        %v1688 = vmax.f32 %v1476, 0.0
        %v1689 = vmax.f32 %v1587, 0.0
        %v1690 = vmax.f32 %v1589, 0.0
        %v1691 = vmax.f32 %v1252, 0.0
        %v1692 = vmax.f32 %v1254, 0.0
        %v1693 = vmax.f32 %v1365, 0.0
        %v1694 = vmax.f32 %v1367, 0.0
        %v1695 = vmax.f32 %v1478, 0.0
        %v1696 = vmax.f32 %v1480, 0.0
        %v1697 = vmax.f32 %v1591, 0.0
        %v1698 = vmax.f32 %v1593, 0.0
        %v1699 = vmax.f32 %v1258, 0.0
        %v1700 = vmax.f32 %v1260, 0.0
        %v1701 = vmax.f32 %v1371, 0.0
        %v1702 = vmax.f32 %v1373, 0.0
        %v1703 = vmax.f32 %v1484, 0.0
        %v1704 = vmax.f32 %v1486, 0.0
        %v1705 = vmax.f32 %v1597, 0.0
        %v1706 = vmax.f32 %v1599, 0.0
        %v1707 = vmax.f32 %v1262, 0.0
        %v1708 = vmax.f32 %v1264, 0.0
        %v1709 = vmax.f32 %v1375, 0.0
        %v1710 = vmax.f32 %v1377, 0.0
        %v1711 = vmax.f32 %v1488, 0.0
        %v1712 = vmax.f32 %v1490, 0.0
        %v1713 = vmax.f32 %v1601, 0.0
        %v1714 = vmax.f32 %v1603, 0.0
        %v1715 = vmax.f32 %v1268, 0.0
        %v1716 = vmax.f32 %v1270, 0.0
        %v1717 = vmax.f32 %v1381, 0.0
        %v1718 = vmax.f32 %v1383, 0.0
        %v1719 = vmax.f32 %v1494, 0.0
        %v1720 = vmax.f32 %v1496, 0.0
        %v1721 = vmax.f32 %v1607, 0.0
        %v1722 = vmax.f32 %v1609, 0.0
        %v1723 = vmax.f32 %v1272, 0.0
        %v1724 = vmax.f32 %v1274, 0.0
        %v1725 = vmax.f32 %v1385, 0.0
        %v1726 = vmax.f32 %v1387, 0.0
        %v1727 = vmax.f32 %v1498, 0.0
        %v1728 = vmax.f32 %v1500, 0.0
        %v1729 = vmax.f32 %v1611, 0.0
        %v1730 = vmax.f32 %v1613, 0.0
        %v1731 = vmax.f32 %v1278, 0.0
        %v1732 = vmax.f32 %v1280, 0.0
        %v1733 = vmax.f32 %v1391, 0.0
        %v1734 = vmax.f32 %v1393, 0.0
        %v1735 = vmax.f32 %v1504, 0.0
        %v1736 = vmax.f32 %v1506, 0.0
        %v1737 = vmax.f32 %v1617, 0.0
        %v1738 = vmax.f32 %v1619, 0.0
        %v1739 = vmax.f32 %v1282, 0.0
        %v1740 = vmax.f32 %v1284, 0.0
        %v1741 = vmax.f32 %v1395, 0.0
        %v1742 = vmax.f32 %v1397, 0.0
        %v1743 = vmax.f32 %v1508, 0.0
        %v1744 = vmax.f32 %v1510, 0.0
        %v1745 = vmax.f32 %v1621, 0.0
        %v1746 = vmax.f32 %v1623, 0.0
        %v1747 = vmax.f32 %v1288, 0.0
        %v1748 = vmax.f32 %v1290, 0.0
        %v1749 = vmax.f32 %v1401, 0.0
        %v1750 = vmax.f32 %v1403, 0.0
        %v1751 = vmax.f32 %v1514, 0.0
        %v1752 = vmax.f32 %v1516, 0.0
        %v1753 = vmax.f32 %v1627, 0.0
        %v1754 = vmax.f32 %v1629, 0.0
        %v1755 = vmax.f32 %v1292, 0.0
        %v1756 = vmax.f32 %v1294, 0.0
        %v1757 = vmax.f32 %v1405, 0.0
        %v1758 = vmax.f32 %v1407, 0.0
        %v1759 = vmax.f32 %v1518, 0.0
        %v1760 = vmax.f32 %v1520, 0.0
        %v1761 = vmax.f32 %v1631, 0.0
        %v1762 = vmax.f32 %v1633, 0.0
        %p1763 = scmp.ne.s32.totalorder %s27, 0
        // Predicated region
        $region57: #{tpu_custom_call.1} parent=47 // pred_check
          %p1764 = pneg %p1763
        $region58: #{tpu_custom_call.1} parent=47 // pred_check_branch
          %1766 = sbr.rel (%p1764) target = $region60
        $region59: #{tpu_custom_call.1} parent=47 // pred_region
          %v1767 = vld [vmem:[#allocation2] sm:$0xff]
          %v1768 = vmax.f32 %v1635, %v1643
          %v1769 = vmax.f32 %v1768, %v1651
          %v1770 = vmax.f32 %v1769, %v1659
          %v1771 = vmax.f32 %v1770, %v1667
          %v1772 = vmax.f32 %v1771, %v1675
          %v1773 = vmax.f32 %v1772, %v1683
          %v1774 = vmax.f32 %v1773, %v1691
          %v1775 = vmax.f32 %v1774, %v1699
          %v1776 = vmax.f32 %v1775, %v1707
          %v1777 = vmax.f32 %v1776, %v1715
          %v1778 = vmax.f32 %v1777, %v1723
          %v1779 = vmax.f32 %v1778, %v1731
          %v1780 = vmax.f32 %v1779, %v1739
          %v1781 = vmax.f32 %v1780, %v1747
          %v1782 = vmax.f32 %v1781, %v1755
          %v1783 = vrot.slane %v1782, 4
          %v1784 = vmax.f32 %v1782, %v1783
          %v1785 = vrot.slane %v1784, 2
          %v1786 = vmax.f32 %v1784, %v1785
          %v1787 = vrot.slane %v1786, 1
          %v1788 = vmax.f32 %v1786, %v1787
          %v1789 = vmax.f32 %v1636, %v1644
          %v1790 = vmax.f32 %v1789, %v1652
          %v1791 = vmax.f32 %v1790, %v1660
          %v1792 = vmax.f32 %v1791, %v1668
          %v1793 = vmax.f32 %v1792, %v1676
          %v1794 = vmax.f32 %v1793, %v1684
          %v1795 = vmax.f32 %v1794, %v1692
          %v1796 = vmax.f32 %v1795, %v1700
          %v1797 = vmax.f32 %v1796, %v1708
          %v1798 = vmax.f32 %v1797, %v1716
          %v1799 = vmax.f32 %v1798, %v1724
          %v1800 = vmax.f32 %v1799, %v1732
          %v1801 = vmax.f32 %v1800, %v1740
          %v1802 = vmax.f32 %v1801, %v1748
          %v1803 = vmax.f32 %v1802, %v1756
          %v1804 = vrot.slane %v1803, 4
          %v1805 = vmax.f32 %v1803, %v1804
          %v1806 = vrot.slane %v1805, 2
          %v1807 = vmax.f32 %v1805, %v1806
          %v1808 = vrot.slane %v1807, 1
          %v1809 = vmax.f32 %v1807, %v1808
          %v1810 = vmax.f32 %v1637, %v1645
          %v1811 = vmax.f32 %v1810, %v1653
          %v1812 = vmax.f32 %v1811, %v1661
          %v1813 = vmax.f32 %v1812, %v1669
          %v1814 = vmax.f32 %v1813, %v1677
          %v1815 = vmax.f32 %v1814, %v1685
          %v1816 = vmax.f32 %v1815, %v1693
          %v1817 = vmax.f32 %v1816, %v1701
          %v1818 = vmax.f32 %v1817, %v1709
          %v1819 = vmax.f32 %v1818, %v1717
          %v1820 = vmax.f32 %v1819, %v1725
          %v1821 = vmax.f32 %v1820, %v1733
          %v1822 = vmax.f32 %v1821, %v1741
          %v1823 = vmax.f32 %v1822, %v1749
          %v1824 = vmax.f32 %v1823, %v1757
          %v1825 = vrot.slane %v1824, 4
          %v1826 = vmax.f32 %v1824, %v1825
          %v1827 = vrot.slane %v1826, 2
          %v1828 = vmax.f32 %v1826, %v1827
          %v1829 = vrot.slane %v1828, 1
          %v1830 = vmax.f32 %v1828, %v1829
          %v1831 = vmax.f32 %v1638, %v1646
          %v1832 = vmax.f32 %v1831, %v1654
          %v1833 = vmax.f32 %v1832, %v1662
          %v1834 = vmax.f32 %v1833, %v1670
          %v1835 = vmax.f32 %v1834, %v1678
          %v1836 = vmax.f32 %v1835, %v1686
          %v1837 = vmax.f32 %v1836, %v1694
          %v1838 = vmax.f32 %v1837, %v1702
          %v1839 = vmax.f32 %v1838, %v1710
          %v1840 = vmax.f32 %v1839, %v1718
          %v1841 = vmax.f32 %v1840, %v1726
          %v1842 = vmax.f32 %v1841, %v1734
          %v1843 = vmax.f32 %v1842, %v1742
          %v1844 = vmax.f32 %v1843, %v1750
          %v1845 = vmax.f32 %v1844, %v1758
          %v1846 = vrot.slane %v1845, 4
          %v1847 = vmax.f32 %v1845, %v1846
          %v1848 = vrot.slane %v1847, 2
          %v1849 = vmax.f32 %v1847, %v1848
          %v1850 = vrot.slane %v1849, 1
          %v1851 = vmax.f32 %v1849, %v1850
          %v1852 = vmax.f32 %v1639, %v1647
          %v1853 = vmax.f32 %v1852, %v1655
          %v1854 = vmax.f32 %v1853, %v1663
          %v1855 = vmax.f32 %v1854, %v1671
          %v1856 = vmax.f32 %v1855, %v1679
          %v1857 = vmax.f32 %v1856, %v1687
          %v1858 = vmax.f32 %v1857, %v1695
          %v1859 = vmax.f32 %v1858, %v1703
          %v1860 = vmax.f32 %v1859, %v1711
          %v1861 = vmax.f32 %v1860, %v1719
          %v1862 = vmax.f32 %v1861, %v1727
          %v1863 = vmax.f32 %v1862, %v1735
          %v1864 = vmax.f32 %v1863, %v1743
          %v1865 = vmax.f32 %v1864, %v1751
          %v1866 = vmax.f32 %v1865, %v1759
          %v1867 = vrot.slane %v1866, 4
          %v1868 = vmax.f32 %v1866, %v1867
          %v1869 = vrot.slane %v1868, 2
          %v1870 = vmax.f32 %v1868, %v1869
          %v1871 = vrot.slane %v1870, 1
          %v1872 = vmax.f32 %v1870, %v1871
          %v1873 = vmax.f32 %v1640, %v1648
          %v1874 = vmax.f32 %v1873, %v1656
          %v1875 = vmax.f32 %v1874, %v1664
          %v1876 = vmax.f32 %v1875, %v1672
          %v1877 = vmax.f32 %v1876, %v1680
          %v1878 = vmax.f32 %v1877, %v1688
          %v1879 = vmax.f32 %v1878, %v1696
          %v1880 = vmax.f32 %v1879, %v1704
          %v1881 = vmax.f32 %v1880, %v1712
          %v1882 = vmax.f32 %v1881, %v1720
          %v1883 = vmax.f32 %v1882, %v1728
          %v1884 = vmax.f32 %v1883, %v1736
          %v1885 = vmax.f32 %v1884, %v1744
          %v1886 = vmax.f32 %v1885, %v1752
          %v1887 = vmax.f32 %v1886, %v1760
          %v1888 = vrot.slane %v1887, 4
          %v1889 = vmax.f32 %v1887, %v1888
          %v1890 = vrot.slane %v1889, 2
          %v1891 = vmax.f32 %v1889, %v1890
          %v1892 = vrot.slane %v1891, 1
          %v1893 = vmax.f32 %v1891, %v1892
          %v1894 = vmax.f32 %v1641, %v1649
          %v1895 = vmax.f32 %v1894, %v1657
          %v1896 = vmax.f32 %v1895, %v1665
          %v1897 = vmax.f32 %v1896, %v1673
          %v1898 = vmax.f32 %v1897, %v1681
          %v1899 = vmax.f32 %v1898, %v1689
          %v1900 = vmax.f32 %v1899, %v1697
          %v1901 = vmax.f32 %v1900, %v1705
          %v1902 = vmax.f32 %v1901, %v1713
          %v1903 = vmax.f32 %v1902, %v1721
          %v1904 = vmax.f32 %v1903, %v1729
          %v1905 = vmax.f32 %v1904, %v1737
          %v1906 = vmax.f32 %v1905, %v1745
          %v1907 = vmax.f32 %v1906, %v1753
          %v1908 = vmax.f32 %v1907, %v1761
          %v1909 = vrot.slane %v1908, 4
          %v1910 = vmax.f32 %v1908, %v1909
          %v1911 = vrot.slane %v1910, 2
          %v1912 = vmax.f32 %v1910, %v1911
          %v1913 = vrot.slane %v1912, 1
          %v1914 = vmax.f32 %v1912, %v1913
          %v1915 = vmax.f32 %v1642, %v1650
          %v1916 = vmax.f32 %v1915, %v1658
          %v1917 = vmax.f32 %v1916, %v1666
          %v1918 = vmax.f32 %v1917, %v1674
          %v1919 = vmax.f32 %v1918, %v1682
          %v1920 = vmax.f32 %v1919, %v1690
          %v1921 = vmax.f32 %v1920, %v1698
          %v1922 = vmax.f32 %v1921, %v1706
          %v1923 = vmax.f32 %v1922, %v1714
          %v1924 = vmax.f32 %v1923, %v1722
          %v1925 = vmax.f32 %v1924, %v1730
          %v1926 = vmax.f32 %v1925, %v1738
          %v1927 = vmax.f32 %v1926, %v1746
          %v1928 = vmax.f32 %v1927, %v1754
          %v1929 = vmax.f32 %v1928, %v1762
          %v1930 = vrot.slane %v1929, 4
          %v1931 = vmax.f32 %v1929, %v1930
          %v1932 = vrot.slane %v1931, 2
          %v1933 = vmax.f32 %v1931, %v1932
          %v1934 = vrot.slane %v1933, 1
          %v1935 = vmax.f32 %v1933, %v1934
          %v1944 = vcombine.low %v1788, %v1809
          %v1945 = vcombine.low %v1830, %v1851
          %v1946 = vcombine.low %v1872, %v1893
          %v1947 = vcombine.low %v1914, %v1935
          %v1949 = vunpack.c.l.s4 1966171168
          %v1950 = vunpack.c.0.s8 %v1949
          %v1951 = vlaneseq
          %v1952 = vshrl.u32 %v1951, 7
          %v1953 = vsub.s32 %v1950, %v1952
          %v1954 = vrot.slane %v1944, %v1953
          %v1956 = vunpack.c.l.s4 1966171168
          %v1957 = vunpack.c.0.s8 %v1956
          %v1958 = vlaneseq
          %v1959 = vshrl.u32 %v1958, 7
          %v1960 = vsub.s32 %v1957, %v1959
          %v1961 = vrot.slane %v1945, %v1960
          %v1963 = vunpack.c.l.s4 1966171168
          %v1964 = vunpack.c.0.s8 %v1963
          %v1965 = vlaneseq
          %v1966 = vshrl.u32 %v1965, 7
          %v1967 = vsub.s32 %v1964, %v1966
          %v1968 = vrot.slane %v1946, %v1967
          %v1970 = vunpack.c.l.s4 1966171168
          %v1971 = vunpack.c.0.s8 %v1970
          %v1972 = vlaneseq
          %v1973 = vshrl.u32 %v1972, 7
          %v1974 = vsub.s32 %v1971, %v1973
          %v1975 = vrot.slane %v1947, %v1974
          %v1976 = vcombine.low %v1954, %v1961
          %v1977 = vcombine.low %v1968, %v1975
          %v1979 = vunpack.c.l.s4 1966171168
          %v1980 = vunpack.c.0.s8 %v1979
          %v1981 = vlaneseq
          %v1982 = vshrl.u32 %v1981, 7
          %v1983 = vsub.s32 %v1980, %v1982
          %v1984 = vrot.slane %v1976, %v1983
          %v1986 = vunpack.c.l.s4 1966171168
          %v1987 = vunpack.c.0.s8 %v1986
          %v1988 = vlaneseq
          %v1989 = vshrl.u32 %v1988, 7
          %v1990 = vsub.s32 %v1987, %v1989
          %v1991 = vrot.slane %v1977, %v1990
          %v1992 = vcombine.low %v1984, %v1991
          %v1994 = vmax.f32 %v1767, %v1992
          %1995 = vst [vmem:[#allocation2] sm:$0xff] %v1994
        $region60: #{tpu_custom_call.1} parent=47 // pred_fallthru
          _
        // Predicated region
        $region61: #{tpu_custom_call.1} parent=47 // pred_check
          %p1996 = pneg %p321
        $region62: #{tpu_custom_call.1} parent=47 // pred_check_branch
          %1998 = sbr.rel (%p1996) target = $region64
        $region63: #{tpu_custom_call.1} parent=47 // pred_region
          %s1999 = smul.u32 %s27, 128
          %v2000 = vlaneseq
          %v2001 = vshrl.u32 %v2000, 7
          %v2002 = vadd.s32 %v2001, 8
          %v2003 = vadd.s32 %v2001, 16
          %v2004 = vadd.s32 %v2001, 24
          %v2005 = vadd.s32 %v2001, 32
          %v2006 = vadd.s32 %v2001, 40
          %v2007 = vadd.s32 %v2001, 48
          %v2008 = vadd.s32 %v2001, 56
          %v2009 = vadd.s32 %v2001, 64
          %v2010 = vadd.s32 %v2001, 72
          %v2011 = vadd.s32 %v2001, 80
          %v2012 = vadd.s32 %v2001, 88
          %v2013 = vadd.s32 %v2001, 96
          %v2014 = vadd.s32 %v2001, 104
          %v2015 = vadd.s32 %v2001, 112
          %v2016 = vadd.s32 %v2001, 120
          %v2017 = vstv %s1999
          %v2018 = vadd.s32 %v2017, %v2001
          %v2019 = vadd.s32 %v2017, %v2002
          %v2020 = vadd.s32 %v2017, %v2003
          %v2021 = vadd.s32 %v2017, %v2004
          %v2022 = vadd.s32 %v2017, %v2005
          %v2023 = vadd.s32 %v2017, %v2006
          %v2024 = vadd.s32 %v2017, %v2007
          %v2025 = vadd.s32 %v2017, %v2008
          %v2026 = vadd.s32 %v2017, %v2009
          %v2027 = vadd.s32 %v2017, %v2010
          %v2028 = vadd.s32 %v2017, %v2011
          %v2029 = vadd.s32 %v2017, %v2012
          %v2030 = vadd.s32 %v2017, %v2013
          %v2031 = vadd.s32 %v2017, %v2014
          %v2032 = vadd.s32 %v2017, %v2015
          %v2033 = vadd.s32 %v2017, %v2016
          %vm2034 = vcmp.lt.s32.totalorder %v2018, 16
          %vm2035 = vcmp.lt.s32.totalorder %v2019, 16
          %vm2036 = vcmp.lt.s32.totalorder %v2020, 16
          %vm2037 = vcmp.lt.s32.totalorder %v2021, 16
          %vm2038 = vcmp.lt.s32.totalorder %v2022, 16
          %vm2039 = vcmp.lt.s32.totalorder %v2023, 16
          %vm2040 = vcmp.lt.s32.totalorder %v2024, 16
          %vm2041 = vcmp.lt.s32.totalorder %v2025, 16
          %vm2042 = vcmp.lt.s32.totalorder %v2026, 16
          %vm2043 = vcmp.lt.s32.totalorder %v2027, 16
          %vm2044 = vcmp.lt.s32.totalorder %v2028, 16
          %vm2045 = vcmp.lt.s32.totalorder %v2029, 16
          %vm2046 = vcmp.lt.s32.totalorder %v2030, 16
          %vm2047 = vcmp.lt.s32.totalorder %v2031, 16
          %vm2048 = vcmp.lt.s32.totalorder %v2032, 16
          %vm2049 = vcmp.lt.s32.totalorder %v2033, 16
          %v2050 = vsel %vm2034, 1, 0
          %v2051 = vsel %vm2035, 1, 0
          %v2052 = vsel %vm2036, 1, 0
          %v2053 = vsel %vm2037, 1, 0
          %v2054 = vsel %vm2038, 1, 0
          %v2055 = vsel %vm2039, 1, 0
          %v2056 = vsel %vm2040, 1, 0
          %v2057 = vsel %vm2041, 1, 0
          %v2058 = vsel %vm2042, 1, 0
          %v2059 = vsel %vm2043, 1, 0
          %v2060 = vsel %vm2044, 1, 0
          %v2061 = vsel %vm2045, 1, 0
          %v2062 = vsel %vm2046, 1, 0
          %v2063 = vsel %vm2047, 1, 0
          %v2064 = vsel %vm2048, 1, 0
          %v2065 = vsel %vm2049, 1, 0
          %vm2066 = vcmp.eq.s32.totalorder %v2050, 1
          %vm2067 = vcmp.eq.s32.totalorder %v2051, 1
          %vm2068 = vcmp.eq.s32.totalorder %v2052, 1
          %vm2069 = vcmp.eq.s32.totalorder %v2053, 1
          %vm2070 = vcmp.eq.s32.totalorder %v2054, 1
          %vm2071 = vcmp.eq.s32.totalorder %v2055, 1
          %vm2072 = vcmp.eq.s32.totalorder %v2056, 1
          %vm2073 = vcmp.eq.s32.totalorder %v2057, 1
          %vm2074 = vcmp.eq.s32.totalorder %v2058, 1
          %vm2075 = vcmp.eq.s32.totalorder %v2059, 1
          %vm2076 = vcmp.eq.s32.totalorder %v2060, 1
          %vm2077 = vcmp.eq.s32.totalorder %v2061, 1
          %vm2078 = vcmp.eq.s32.totalorder %v2062, 1
          %vm2079 = vcmp.eq.s32.totalorder %v2063, 1
          %vm2080 = vcmp.eq.s32.totalorder %v2064, 1
          %vm2081 = vcmp.eq.s32.totalorder %v2065, 1
          %v2082 = vsel %vm2066, %v1635, -inf
          %v2083 = vsel %vm2066, %v1636, -inf
          %v2084 = vsel %vm2066, %v1637, -inf
          %v2085 = vsel %vm2066, %v1638, -inf
          %v2086 = vsel %vm2066, %v1639, -inf
          %v2087 = vsel %vm2066, %v1640, -inf
          %v2088 = vsel %vm2066, %v1641, -inf
          %v2089 = vsel %vm2066, %v1642, -inf
          %v2090 = vsel %vm2067, %v1643, -inf
          %v2091 = vsel %vm2067, %v1644, -inf
          %v2092 = vsel %vm2067, %v1645, -inf
          %v2093 = vsel %vm2067, %v1646, -inf
          %v2094 = vsel %vm2067, %v1647, -inf
          %v2095 = vsel %vm2067, %v1648, -inf
          %v2096 = vsel %vm2067, %v1649, -inf
          %v2097 = vsel %vm2067, %v1650, -inf
          %v2098 = vsel %vm2068, %v1651, -inf
          %v2099 = vsel %vm2068, %v1652, -inf
          %v2100 = vsel %vm2068, %v1653, -inf
          %v2101 = vsel %vm2068, %v1654, -inf
          %v2102 = vsel %vm2068, %v1655, -inf
          %v2103 = vsel %vm2068, %v1656, -inf
          %v2104 = vsel %vm2068, %v1657, -inf
          %v2105 = vsel %vm2068, %v1658, -inf
          %v2106 = vsel %vm2069, %v1659, -inf
          %v2107 = vsel %vm2069, %v1660, -inf
          %v2108 = vsel %vm2069, %v1661, -inf
          %v2109 = vsel %vm2069, %v1662, -inf
          %v2110 = vsel %vm2069, %v1663, -inf
          %v2111 = vsel %vm2069, %v1664, -inf
          %v2112 = vsel %vm2069, %v1665, -inf
          %v2113 = vsel %vm2069, %v1666, -inf
          %v2114 = vsel %vm2070, %v1667, -inf
          %v2115 = vsel %vm2070, %v1668, -inf
          %v2116 = vsel %vm2070, %v1669, -inf
          %v2117 = vsel %vm2070, %v1670, -inf
          %v2118 = vsel %vm2070, %v1671, -inf
          %v2119 = vsel %vm2070, %v1672, -inf
          %v2120 = vsel %vm2070, %v1673, -inf
          %v2121 = vsel %vm2070, %v1674, -inf
          %v2122 = vsel %vm2071, %v1675, -inf
          %v2123 = vsel %vm2071, %v1676, -inf
          %v2124 = vsel %vm2071, %v1677, -inf
          %v2125 = vsel %vm2071, %v1678, -inf
          %v2126 = vsel %vm2071, %v1679, -inf
          %v2127 = vsel %vm2071, %v1680, -inf
          %v2128 = vsel %vm2071, %v1681, -inf
          %v2129 = vsel %vm2071, %v1682, -inf
          %v2130 = vsel %vm2072, %v1683, -inf
          %v2131 = vsel %vm2072, %v1684, -inf
          %v2132 = vsel %vm2072, %v1685, -inf
          %v2133 = vsel %vm2072, %v1686, -inf
          %v2134 = vsel %vm2072, %v1687, -inf
          %v2135 = vsel %vm2072, %v1688, -inf
          %v2136 = vsel %vm2072, %v1689, -inf
          %v2137 = vsel %vm2072, %v1690, -inf
          %v2138 = vsel %vm2073, %v1691, -inf
          %v2139 = vsel %vm2073, %v1692, -inf
          %v2140 = vsel %vm2073, %v1693, -inf
          %v2141 = vsel %vm2073, %v1694, -inf
          %v2142 = vsel %vm2073, %v1695, -inf
          %v2143 = vsel %vm2073, %v1696, -inf
          %v2144 = vsel %vm2073, %v1697, -inf
          %v2145 = vsel %vm2073, %v1698, -inf
          %v2146 = vsel %vm2074, %v1699, -inf
          %v2147 = vsel %vm2074, %v1700, -inf
          %v2148 = vsel %vm2074, %v1701, -inf
          %v2149 = vsel %vm2074, %v1702, -inf
          %v2150 = vsel %vm2074, %v1703, -inf
          %v2151 = vsel %vm2074, %v1704, -inf
          %v2152 = vsel %vm2074, %v1705, -inf
          %v2153 = vsel %vm2074, %v1706, -inf
          %v2154 = vsel %vm2075, %v1707, -inf
          %v2155 = vsel %vm2075, %v1708, -inf
          %v2156 = vsel %vm2075, %v1709, -inf
          %v2157 = vsel %vm2075, %v1710, -inf
          %v2158 = vsel %vm2075, %v1711, -inf
          %v2159 = vsel %vm2075, %v1712, -inf
          %v2160 = vsel %vm2075, %v1713, -inf
          %v2161 = vsel %vm2075, %v1714, -inf
          %v2162 = vsel %vm2076, %v1715, -inf
          %v2163 = vsel %vm2076, %v1716, -inf
          %v2164 = vsel %vm2076, %v1717, -inf
          %v2165 = vsel %vm2076, %v1718, -inf
          %v2166 = vsel %vm2076, %v1719, -inf
          %v2167 = vsel %vm2076, %v1720, -inf
          %v2168 = vsel %vm2076, %v1721, -inf
          %v2169 = vsel %vm2076, %v1722, -inf
          %v2170 = vsel %vm2077, %v1723, -inf
          %v2171 = vsel %vm2077, %v1724, -inf
          %v2172 = vsel %vm2077, %v1725, -inf
          %v2173 = vsel %vm2077, %v1726, -inf
          %v2174 = vsel %vm2077, %v1727, -inf
          %v2175 = vsel %vm2077, %v1728, -inf
          %v2176 = vsel %vm2077, %v1729, -inf
          %v2177 = vsel %vm2077, %v1730, -inf
          %v2178 = vsel %vm2078, %v1731, -inf
          %v2179 = vsel %vm2078, %v1732, -inf
          %v2180 = vsel %vm2078, %v1733, -inf
          %v2181 = vsel %vm2078, %v1734, -inf
          %v2182 = vsel %vm2078, %v1735, -inf
          %v2183 = vsel %vm2078, %v1736, -inf
          %v2184 = vsel %vm2078, %v1737, -inf
          %v2185 = vsel %vm2078, %v1738, -inf
          %v2186 = vsel %vm2079, %v1739, -inf
          %v2187 = vsel %vm2079, %v1740, -inf
          %v2188 = vsel %vm2079, %v1741, -inf
          %v2189 = vsel %vm2079, %v1742, -inf
          %v2190 = vsel %vm2079, %v1743, -inf
          %v2191 = vsel %vm2079, %v1744, -inf
          %v2192 = vsel %vm2079, %v1745, -inf
          %v2193 = vsel %vm2079, %v1746, -inf
          %v2194 = vsel %vm2080, %v1747, -inf
          %v2195 = vsel %vm2080, %v1748, -inf
          %v2196 = vsel %vm2080, %v1749, -inf
          %v2197 = vsel %vm2080, %v1750, -inf
          %v2198 = vsel %vm2080, %v1751, -inf
          %v2199 = vsel %vm2080, %v1752, -inf
          %v2200 = vsel %vm2080, %v1753, -inf
          %v2201 = vsel %vm2080, %v1754, -inf
          %v2202 = vsel %vm2081, %v1755, -inf
          %v2203 = vsel %vm2081, %v1756, -inf
          %v2204 = vsel %vm2081, %v1757, -inf
          %v2205 = vsel %vm2081, %v1758, -inf
          %v2206 = vsel %vm2081, %v1759, -inf
          %v2207 = vsel %vm2081, %v1760, -inf
          %v2208 = vsel %vm2081, %v1761, -inf
          %v2209 = vsel %vm2081, %v1762, -inf
          %v2210 = vld [vmem:[#allocation2] sm:$0xff]
          %v2211 = vmax.f32 %v2082, %v2090
          %v2212 = vmax.f32 %v2211, %v2098
          %v2213 = vmax.f32 %v2212, %v2106
          %v2214 = vmax.f32 %v2213, %v2114
          %v2215 = vmax.f32 %v2214, %v2122
          %v2216 = vmax.f32 %v2215, %v2130
          %v2217 = vmax.f32 %v2216, %v2138
          %v2218 = vmax.f32 %v2217, %v2146
          %v2219 = vmax.f32 %v2218, %v2154
          %v2220 = vmax.f32 %v2219, %v2162
          %v2221 = vmax.f32 %v2220, %v2170
          %v2222 = vmax.f32 %v2221, %v2178
          %v2223 = vmax.f32 %v2222, %v2186
          %v2224 = vmax.f32 %v2223, %v2194
          %v2225 = vmax.f32 %v2224, %v2202
          %v2226 = vrot.slane %v2225, 4
          %v2227 = vmax.f32 %v2225, %v2226
          %v2228 = vrot.slane %v2227, 2
          %v2229 = vmax.f32 %v2227, %v2228
          %v2230 = vrot.slane %v2229, 1
          %v2231 = vmax.f32 %v2229, %v2230
          %v2232 = vmax.f32 %v2083, %v2091
          %v2233 = vmax.f32 %v2232, %v2099
          %v2234 = vmax.f32 %v2233, %v2107
          %v2235 = vmax.f32 %v2234, %v2115
          %v2236 = vmax.f32 %v2235, %v2123
          %v2237 = vmax.f32 %v2236, %v2131
          %v2238 = vmax.f32 %v2237, %v2139
          %v2239 = vmax.f32 %v2238, %v2147
          %v2240 = vmax.f32 %v2239, %v2155
          %v2241 = vmax.f32 %v2240, %v2163
          %v2242 = vmax.f32 %v2241, %v2171
          %v2243 = vmax.f32 %v2242, %v2179
          %v2244 = vmax.f32 %v2243, %v2187
          %v2245 = vmax.f32 %v2244, %v2195
          %v2246 = vmax.f32 %v2245, %v2203
          %v2247 = vrot.slane %v2246, 4
          %v2248 = vmax.f32 %v2246, %v2247
          %v2249 = vrot.slane %v2248, 2
          %v2250 = vmax.f32 %v2248, %v2249
          %v2251 = vrot.slane %v2250, 1
          %v2252 = vmax.f32 %v2250, %v2251
          %v2253 = vmax.f32 %v2084, %v2092
          %v2254 = vmax.f32 %v2253, %v2100
          %v2255 = vmax.f32 %v2254, %v2108
          %v2256 = vmax.f32 %v2255, %v2116
          %v2257 = vmax.f32 %v2256, %v2124
          %v2258 = vmax.f32 %v2257, %v2132
          %v2259 = vmax.f32 %v2258, %v2140
          %v2260 = vmax.f32 %v2259, %v2148
          %v2261 = vmax.f32 %v2260, %v2156
          %v2262 = vmax.f32 %v2261, %v2164
          %v2263 = vmax.f32 %v2262, %v2172
          %v2264 = vmax.f32 %v2263, %v2180
          %v2265 = vmax.f32 %v2264, %v2188
          %v2266 = vmax.f32 %v2265, %v2196
          %v2267 = vmax.f32 %v2266, %v2204
          %v2268 = vrot.slane %v2267, 4
          %v2269 = vmax.f32 %v2267, %v2268
          %v2270 = vrot.slane %v2269, 2
          %v2271 = vmax.f32 %v2269, %v2270
          %v2272 = vrot.slane %v2271, 1
          %v2273 = vmax.f32 %v2271, %v2272
          %v2274 = vmax.f32 %v2085, %v2093
          %v2275 = vmax.f32 %v2274, %v2101
          %v2276 = vmax.f32 %v2275, %v2109
          %v2277 = vmax.f32 %v2276, %v2117
          %v2278 = vmax.f32 %v2277, %v2125
          %v2279 = vmax.f32 %v2278, %v2133
          %v2280 = vmax.f32 %v2279, %v2141
          %v2281 = vmax.f32 %v2280, %v2149
          %v2282 = vmax.f32 %v2281, %v2157
          %v2283 = vmax.f32 %v2282, %v2165
          %v2284 = vmax.f32 %v2283, %v2173
          %v2285 = vmax.f32 %v2284, %v2181
          %v2286 = vmax.f32 %v2285, %v2189
          %v2287 = vmax.f32 %v2286, %v2197
          %v2288 = vmax.f32 %v2287, %v2205
          %v2289 = vrot.slane %v2288, 4
          %v2290 = vmax.f32 %v2288, %v2289
          %v2291 = vrot.slane %v2290, 2
          %v2292 = vmax.f32 %v2290, %v2291
          %v2293 = vrot.slane %v2292, 1
          %v2294 = vmax.f32 %v2292, %v2293
          %v2295 = vmax.f32 %v2086, %v2094
          %v2296 = vmax.f32 %v2295, %v2102
          %v2297 = vmax.f32 %v2296, %v2110
          %v2298 = vmax.f32 %v2297, %v2118
          %v2299 = vmax.f32 %v2298, %v2126
          %v2300 = vmax.f32 %v2299, %v2134
          %v2301 = vmax.f32 %v2300, %v2142
          %v2302 = vmax.f32 %v2301, %v2150
          %v2303 = vmax.f32 %v2302, %v2158
          %v2304 = vmax.f32 %v2303, %v2166
          %v2305 = vmax.f32 %v2304, %v2174
          %v2306 = vmax.f32 %v2305, %v2182
          %v2307 = vmax.f32 %v2306, %v2190
          %v2308 = vmax.f32 %v2307, %v2198
          %v2309 = vmax.f32 %v2308, %v2206
          %v2310 = vrot.slane %v2309, 4
          %v2311 = vmax.f32 %v2309, %v2310
          %v2312 = vrot.slane %v2311, 2
          %v2313 = vmax.f32 %v2311, %v2312
          %v2314 = vrot.slane %v2313, 1
          %v2315 = vmax.f32 %v2313, %v2314
          %v2316 = vmax.f32 %v2087, %v2095
          %v2317 = vmax.f32 %v2316, %v2103
          %v2318 = vmax.f32 %v2317, %v2111
          %v2319 = vmax.f32 %v2318, %v2119
          %v2320 = vmax.f32 %v2319, %v2127
          %v2321 = vmax.f32 %v2320, %v2135
          %v2322 = vmax.f32 %v2321, %v2143
          %v2323 = vmax.f32 %v2322, %v2151
          %v2324 = vmax.f32 %v2323, %v2159
          %v2325 = vmax.f32 %v2324, %v2167
          %v2326 = vmax.f32 %v2325, %v2175
          %v2327 = vmax.f32 %v2326, %v2183
          %v2328 = vmax.f32 %v2327, %v2191
          %v2329 = vmax.f32 %v2328, %v2199
          %v2330 = vmax.f32 %v2329, %v2207
          %v2331 = vrot.slane %v2330, 4
          %v2332 = vmax.f32 %v2330, %v2331
          %v2333 = vrot.slane %v2332, 2
          %v2334 = vmax.f32 %v2332, %v2333
          %v2335 = vrot.slane %v2334, 1
          %v2336 = vmax.f32 %v2334, %v2335
          %v2337 = vmax.f32 %v2088, %v2096
          %v2338 = vmax.f32 %v2337, %v2104
          %v2339 = vmax.f32 %v2338, %v2112
          %v2340 = vmax.f32 %v2339, %v2120
          %v2341 = vmax.f32 %v2340, %v2128
          %v2342 = vmax.f32 %v2341, %v2136
          %v2343 = vmax.f32 %v2342, %v2144
          %v2344 = vmax.f32 %v2343, %v2152
          %v2345 = vmax.f32 %v2344, %v2160
          %v2346 = vmax.f32 %v2345, %v2168
          %v2347 = vmax.f32 %v2346, %v2176
          %v2348 = vmax.f32 %v2347, %v2184
          %v2349 = vmax.f32 %v2348, %v2192
          %v2350 = vmax.f32 %v2349, %v2200
          %v2351 = vmax.f32 %v2350, %v2208
          %v2352 = vrot.slane %v2351, 4
          %v2353 = vmax.f32 %v2351, %v2352
          %v2354 = vrot.slane %v2353, 2
          %v2355 = vmax.f32 %v2353, %v2354
          %v2356 = vrot.slane %v2355, 1
          %v2357 = vmax.f32 %v2355, %v2356
          %v2358 = vmax.f32 %v2089, %v2097
          %v2359 = vmax.f32 %v2358, %v2105
          %v2360 = vmax.f32 %v2359, %v2113
          %v2361 = vmax.f32 %v2360, %v2121
          %v2362 = vmax.f32 %v2361, %v2129
          %v2363 = vmax.f32 %v2362, %v2137
          %v2364 = vmax.f32 %v2363, %v2145
          %v2365 = vmax.f32 %v2364, %v2153
          %v2366 = vmax.f32 %v2365, %v2161
          %v2367 = vmax.f32 %v2366, %v2169
          %v2368 = vmax.f32 %v2367, %v2177
          %v2369 = vmax.f32 %v2368, %v2185
          %v2370 = vmax.f32 %v2369, %v2193
          %v2371 = vmax.f32 %v2370, %v2201
          %v2372 = vmax.f32 %v2371, %v2209
          %v2373 = vrot.slane %v2372, 4
          %v2374 = vmax.f32 %v2372, %v2373
          %v2375 = vrot.slane %v2374, 2
          %v2376 = vmax.f32 %v2374, %v2375
          %v2377 = vrot.slane %v2376, 1
          %v2378 = vmax.f32 %v2376, %v2377
          %v2387 = vcombine.low %v2231, %v2252
          %v2388 = vcombine.low %v2273, %v2294
          %v2389 = vcombine.low %v2315, %v2336
          %v2390 = vcombine.low %v2357, %v2378
          %v2392 = vunpack.c.l.s4 1966171168
          %v2393 = vunpack.c.0.s8 %v2392
          %v2394 = vlaneseq
          %v2395 = vshrl.u32 %v2394, 7
          %v2396 = vsub.s32 %v2393, %v2395
          %v2397 = vrot.slane %v2387, %v2396
          %v2399 = vunpack.c.l.s4 1966171168
          %v2400 = vunpack.c.0.s8 %v2399
          %v2401 = vlaneseq
          %v2402 = vshrl.u32 %v2401, 7
          %v2403 = vsub.s32 %v2400, %v2402
          %v2404 = vrot.slane %v2388, %v2403
          %v2406 = vunpack.c.l.s4 1966171168
          %v2407 = vunpack.c.0.s8 %v2406
          %v2408 = vlaneseq
          %v2409 = vshrl.u32 %v2408, 7
          %v2410 = vsub.s32 %v2407, %v2409
          %v2411 = vrot.slane %v2389, %v2410
          %v2413 = vunpack.c.l.s4 1966171168
          %v2414 = vunpack.c.0.s8 %v2413
          %v2415 = vlaneseq
          %v2416 = vshrl.u32 %v2415, 7
          %v2417 = vsub.s32 %v2414, %v2416
          %v2418 = vrot.slane %v2390, %v2417
          %v2419 = vcombine.low %v2397, %v2404
          %v2420 = vcombine.low %v2411, %v2418
          %v2422 = vunpack.c.l.s4 1966171168
          %v2423 = vunpack.c.0.s8 %v2422
          %v2424 = vlaneseq
          %v2425 = vshrl.u32 %v2424, 7
          %v2426 = vsub.s32 %v2423, %v2425
          %v2427 = vrot.slane %v2419, %v2426
          %v2429 = vunpack.c.l.s4 1966171168
          %v2430 = vunpack.c.0.s8 %v2429
          %v2431 = vlaneseq
          %v2432 = vshrl.u32 %v2431, 7
          %v2433 = vsub.s32 %v2430, %v2432
          %v2434 = vrot.slane %v2420, %v2433
          %v2435 = vcombine.low %v2427, %v2434
          %v2437 = vmax.f32 %v2210, %v2435
          %2438 = vst [vmem:[#allocation2] sm:$0xff] %v2437
          %v2439 = vld [vmem:[#allocation2] sm:$0xff]
          %2440 = vst [vmem:[%s309] sm:$0xff] %v2439
        $region64: #{tpu_custom_call.1} parent=47 // pred_fallthru
          _
        %s2441 = sand.u32 %s196, 1
        %s2442 = scalar_lea.sflag [#allocation5], %s2441
        %s2443 = sand.u32 %s196, 1
        %s2444 = smul.addr %s2443, 8
        %s2445 = scalar_lea.vmem [#allocation6], %s2444
        // Predicated region
        $region65: #{tpu_custom_call.1} parent=47 // pred_check
          %p2446 = pneg %p206
        $region66: #{tpu_custom_call.1} parent=47 // pred_check_branch
          %2448 = sbr.rel (%p2446) target = $region68
        $region67: #{tpu_custom_call.1} parent=47 // pred_region
          %s2450 = ssub.s32 128, 128
          %2451 = vsyncadd %s2442, %s2450
          %s2452 = smul.addr %s26, 8
          %s2453 = smul.addr %s2452, 16
          %s2454 = scalar_lea.hbm %s7, %s2453
          %s2456 = sshll.u32 %s2445, 4
          %s2457 = int_to_ptr.vmem [resolvable:$true] %s2456
          %2459 = dma.vmem_to_hbm [thread:$0]  %s2457, 128, %s2454, %s2442
        $region68: #{tpu_custom_call.1} parent=47 // pred_fallthru
          _
      $region48: #{tpu_custom_call.1} parent=5 // pred_fallthru
        _
      %p2460 = scmp.le.s32.totalorder 2, %s17
      // Predicated region
      $region69: #{tpu_custom_call.1} parent=5 // pred_check
        %p2461 = pneg %p2460
      $region70: #{tpu_custom_call.1} parent=5 // pred_check_branch
        %2463 = sbr.rel (%p2461) target = $region72
      $region71: #{tpu_custom_call.1} parent=5 // pred_region
        %s2464 = ssub.s32 %s17, 2
        // Predicated region
        $region73: #{tpu_custom_call.1} parent=71 // pred_check
          %p2465 = pneg %p212
        $region74: #{tpu_custom_call.1} parent=71 // pred_check_branch
          %2467 = sbr.rel (%p2465) target = $region76
        $region75: #{tpu_custom_call.1} parent=71 // pred_region
          %s2468 = sand.u32 %s197, 1
          %s2469 = scalar_lea.sflag [#allocation5], %s2468
          %s2470 = sand.u32 %s197, 1
          %s2471 = smul.addr %s2470, 8
          %s2472 = scalar_lea.vmem [#allocation6], %s2471
          %2473 = dma.done %s2469, 128
        $region76: #{tpu_custom_call.1} parent=71 // pred_fallthru
          _
      $region72: #{tpu_custom_call.1} parent=5 // pred_fallthru
        _
    $region6: #{tpu_custom_call.1} parent=1 // loop_footer
      %s21 = sadd.s32 1, %s17
    $region7: #{tpu_custom_call.1} parent=1 // loop_footer_branch
      %16 = sbr.rel target = $region3
    $region8: #{tpu_custom_call.1} parent=1 // loop_exit
      _
    %2474 = vsyncpa [#allocation4], 1
    %s2475 = scalar_lea.sflag [#allocation4], 1
    %2476 = vsyncpa %s2475, 1
    %2477 = vsyncpa [#allocation5], 1
    %s2478 = scalar_lea.sflag [#allocation5], 1
    %2479 = vsyncpa %s2478, 1

</llo_original>
